<compile_context>
chip_gen: v7x
topology: tpu7x:2x2x1
jax: 0.10.0
libtpu: 0.0.40
codegen_flags: <defaults>
</compile_context>

<pallas_src>
import math
import numpy as np
import jax
import jax.numpy as jnp
from jax.experimental import pallas as pl
from jax.experimental.pallas import tpu as pltpu


# ----------------------------------------------------------------------------
# Gaussian taps exactly as the PyTorch module builds them
# ----------------------------------------------------------------------------
def _gaussian_taps(sigmas):
    taps = []
    for sigma in sigmas:
        ks = int(6 * sigma)
        if ks % 2 == 0:
            ks += 1
        mean = ks // 2
        xc = np.arange(ks, dtype=np.float64)
        g = np.exp(-(xc - mean) ** 2 / (2.0 * sigma ** 2)) / (math.sqrt(2.0 * math.pi) * sigma)
        g = g / g.sum()
        taps.append((int(mean), [float(v) for v in g]))
    return taps


def _round_up(v, m):
    return ((v + m - 1) // m) * m


# ----------------------------------------------------------------------------
# Pallas kernel: all scales for one image, separable 1-D passes, unrolled taps
# ----------------------------------------------------------------------------
def _make_ss_kernel(H, W_out, M, taps):
    def kernel(xpad_ref, out_ref):
        xp = xpad_ref[0]                                   # (HP8, WP) padded image
        for s, (m, g) in enumerate(taps):
            k = 2 * m + 1
            # ---- vertical 1-D Gaussian (sublane axis), over the full padded width ----
            tmp = jnp.float32(g[0]) * xp[M - m:M - m + H, :]
            for t in range(1, k):
                tmp = tmp + jnp.float32(g[t]) * xp[M - m + t:M - m + t + H, :]
            # ---- horizontal 1-D Gaussian (lane axis) ----
            acc = jnp.float32(g[0]) * tmp[:, M - m:M - m + W_out]
            for t in range(1, k):
                acc = acc + jnp.float32(g[t]) * tmp[:, M - m + t:M - m + t + W_out]
            out_ref[0, s, :, :] = acc
    return kernel


def ss_module_pallas(x, sigmas):
    """x: (B, 1, H, W) -> (B, len(sigmas), H, W) float32 (SS_module.forward)."""
    B, C, H, W = x.shape
    assert C == 1, "SS_module uses in_channels=1 convolutions"
    taps = _gaussian_taps(sigmas)
    M = max(m for m, _ in taps)
    S = len(taps)
    assert M < H and M < W, "reflection padding requires pad < spatial dim"

    W_out = _round_up(W, 128)              # lane-dense output stores
    WP = _round_up(W_out + 2 * M, 128)     # lane-aligned padded input width
    HP = H + 2 * M
    HP8 = _round_up(HP, 8)

    x2 = x[:, 0].astype(jnp.float32)
    # One reflection pad (by the max half-kernel) shared by all scales.
    xpad = jnp.pad(x2, ((0, 0), (M, M), (M, M)), mode="reflect")
    # Zero-extend to (8,128)-friendly sizes; the extra rows/cols are never read
    # for valid output pixels and the extra output columns are cropped below.
    xpad = jnp.pad(xpad, ((0, 0), (0, HP8 - HP), (0, WP - (W + 2 * M))))

    kernel = _make_ss_kernel(H, W_out, M, taps)
    out = pl.pallas_call(
        kernel,
        out_shape=jax.ShapeDtypeStruct((B, S, H, W_out), jnp.float32),
        grid=(B,),
        in_specs=[pl.BlockSpec((1, HP8, WP), lambda b: (b, 0, 0))],
        out_specs=pl.BlockSpec((1, S, H, W_out), lambda b: (b, 0, 0, 0)),
        compiler_params=pltpu.CompilerParams(
            dimension_semantics=("parallel",)),
    )(xpad)
    return out[:, :, :, :W]


# ----------------------------------------------------------------------------
# NumPy reference (float64) replicating the PyTorch pipeline exactly
# ----------------------------------------------------------------------------
def _numpy_reference(x, sigmas):
    x = np.asarray(x, dtype=np.float64)      # (B, 1, H, W)
    B, _, H, W = x.shape
    outs = []
    for mean, g in _gaussian_taps(sigmas):
        g = np.asarray(g, dtype=np.float64)
        k = 2 * mean + 1
        ch = np.zeros((B, H, W), dtype=np.float64)
        for b in range(B):
            img = x[b, 0]
            vp = np.pad(img, ((mean, mean), (0, 0)), mode="reflect")
            tmp = np.zeros((H, W), dtype=np.float64)
            for t in range(k):
                tmp += g[t] * vp[t:t + H, :]
            hp = np.pad(tmp, ((0, 0), (mean, mean)), mode="reflect")
            o = np.zeros((H, W), dtype=np.float64)
            for t in range(k):
                o += g[t] * hp[:, t:t + W]
            ch[b] = o
        outs.append(ch)
    return np.stack(outs, axis=1)            # (B, S, H, W)


if __name__ == "__main__":
    key = jax.random.PRNGKey(0)
    B, H, W = 2, 16, 16
    sigmas = [1.0, 1.6, 2.0]                 # -> ksizes 7, 9, 13 (means 3, 4, 6)

    x = jax.random.normal(key, (B, 1, H, W), jnp.float32)

    out = ss_module_pallas(x, sigmas)
    jax.block_until_ready(out)

    ref = _numpy_reference(np.asarray(x), sigmas)
    np.testing.assert_allclose(np.asarray(out), ref, rtol=1e-4, atol=1e-5)
    assert out.shape == (B, len(sigmas), H, W)

    print("KERNEL_OK")
</pallas_src>

<mosaic_0001>
module attributes {stable_mosaic.version = 11 : i64} {
  func.func @kernel(%arg0: i32, %arg1: memref<1x32x256xf32, #tpu.memory_space<vmem>>, %arg2: memref<1x3x16x128xf32, #tpu.memory_space<vmem>>) attributes {dimension_semantics = [#tpu.dimension_semantics<parallel>], iteration_bounds = array<i64: 2>, scalar_prefetch = 0 : i64, scratch_operands = 0 : i64, tpu.core_type = #tpu.core_type<tc>, window_params = [{transform_indices = @transform_0, window_bounds = array<i64: 1, 32, 256>}, {transform_indices = @transform_1, window_bounds = array<i64: 1, 3, 16, 128>}]} {
    %c0 = arith.constant 0 : index
    %c0_0 = arith.constant 0 : index
    %c0_1 = arith.constant 0 : index
    %0 = vector.load %arg1[%c0, %c0_0, %c0_1] : memref<1x32x256xf32, #tpu.memory_space<vmem>>, vector<1x32x256xf32>
    %1 = vector.shape_cast %0 : vector<1x32x256xf32> to vector<32x256xf32>
    %2 = vector.extract_strided_slice %1 {offsets = [3, 0], sizes = [16, 256], strides = [1, 1]} : vector<32x256xf32> to vector<16x256xf32>
    %cst = arith.constant 0.00443304796 : f32
    %3 = vector.broadcast %cst : f32 to vector<16x256xf32>
    %4 = arith.mulf %3, %2 : vector<16x256xf32>
    %5 = vector.extract_strided_slice %1 {offsets = [4, 0], sizes = [16, 256], strides = [1, 1]} : vector<32x256xf32> to vector<16x256xf32>
    %cst_2 = arith.constant 0.0540055819 : f32
    %6 = vector.broadcast %cst_2 : f32 to vector<16x256xf32>
    %7 = arith.mulf %6, %5 : vector<16x256xf32>
    %8 = arith.addf %4, %7 : vector<16x256xf32>
    %9 = vector.extract_strided_slice %1 {offsets = [5, 0], sizes = [16, 256], strides = [1, 1]} : vector<32x256xf32> to vector<16x256xf32>
    %cst_3 = arith.constant 0.242036223 : f32
    %10 = vector.broadcast %cst_3 : f32 to vector<16x256xf32>
    %11 = arith.mulf %10, %9 : vector<16x256xf32>
    %12 = arith.addf %8, %11 : vector<16x256xf32>
    %13 = vector.extract_strided_slice %1 {offsets = [6, 0], sizes = [16, 256], strides = [1, 1]} : vector<32x256xf32> to vector<16x256xf32>
    %cst_4 = arith.constant 0.399050266 : f32
    %14 = vector.broadcast %cst_4 : f32 to vector<16x256xf32>
    %15 = arith.mulf %14, %13 : vector<16x256xf32>
    %16 = arith.addf %12, %15 : vector<16x256xf32>
    %17 = vector.extract_strided_slice %1 {offsets = [7, 0], sizes = [16, 256], strides = [1, 1]} : vector<32x256xf32> to vector<16x256xf32>
    %cst_5 = arith.constant 0.242036223 : f32
    %18 = vector.broadcast %cst_5 : f32 to vector<16x256xf32>
    %19 = arith.mulf %18, %17 : vector<16x256xf32>
    %20 = arith.addf %16, %19 : vector<16x256xf32>
    %21 = vector.extract_strided_slice %1 {offsets = [8, 0], sizes = [16, 256], strides = [1, 1]} : vector<32x256xf32> to vector<16x256xf32>
    %cst_6 = arith.constant 0.0540055819 : f32
    %22 = vector.broadcast %cst_6 : f32 to vector<16x256xf32>
    %23 = arith.mulf %22, %21 : vector<16x256xf32>
    %24 = arith.addf %20, %23 : vector<16x256xf32>
    %25 = vector.extract_strided_slice %1 {offsets = [9, 0], sizes = [16, 256], strides = [1, 1]} : vector<32x256xf32> to vector<16x256xf32>
    %cst_7 = arith.constant 0.00443304796 : f32
    %26 = vector.broadcast %cst_7 : f32 to vector<16x256xf32>
    %27 = arith.mulf %26, %25 : vector<16x256xf32>
    %28 = arith.addf %24, %27 : vector<16x256xf32>
    %29 = vector.extract_strided_slice %28 {offsets = [0, 3], sizes = [16, 128], strides = [1, 1]} : vector<16x256xf32> to vector<16x128xf32>
    %cst_8 = arith.constant 0.00443304796 : f32
    %30 = vector.broadcast %cst_8 : f32 to vector<16x128xf32>
    %31 = arith.mulf %30, %29 : vector<16x128xf32>
    %32 = vector.extract_strided_slice %28 {offsets = [0, 4], sizes = [16, 128], strides = [1, 1]} : vector<16x256xf32> to vector<16x128xf32>
    %cst_9 = arith.constant 0.0540055819 : f32
    %33 = vector.broadcast %cst_9 : f32 to vector<16x128xf32>
    %34 = arith.mulf %33, %32 : vector<16x128xf32>
    %35 = arith.addf %31, %34 : vector<16x128xf32>
    %36 = vector.extract_strided_slice %28 {offsets = [0, 5], sizes = [16, 128], strides = [1, 1]} : vector<16x256xf32> to vector<16x128xf32>
    %cst_10 = arith.constant 0.242036223 : f32
    %37 = vector.broadcast %cst_10 : f32 to vector<16x128xf32>
    %38 = arith.mulf %37, %36 : vector<16x128xf32>
    %39 = arith.addf %35, %38 : vector<16x128xf32>
    %40 = vector.extract_strided_slice %28 {offsets = [0, 6], sizes = [16, 128], strides = [1, 1]} : vector<16x256xf32> to vector<16x128xf32>
    %cst_11 = arith.constant 0.399050266 : f32
    %41 = vector.broadcast %cst_11 : f32 to vector<16x128xf32>
    %42 = arith.mulf %41, %40 : vector<16x128xf32>
    %43 = arith.addf %39, %42 : vector<16x128xf32>
    %44 = vector.extract_strided_slice %28 {offsets = [0, 7], sizes = [16, 128], strides = [1, 1]} : vector<16x256xf32> to vector<16x128xf32>
    %cst_12 = arith.constant 0.242036223 : f32
    %45 = vector.broadcast %cst_12 : f32 to vector<16x128xf32>
    %46 = arith.mulf %45, %44 : vector<16x128xf32>
    %47 = arith.addf %43, %46 : vector<16x128xf32>
    %48 = vector.extract_strided_slice %28 {offsets = [0, 8], sizes = [16, 128], strides = [1, 1]} : vector<16x256xf32> to vector<16x128xf32>
    %cst_13 = arith.constant 0.0540055819 : f32
    %49 = vector.broadcast %cst_13 : f32 to vector<16x128xf32>
    %50 = arith.mulf %49, %48 : vector<16x128xf32>
    %51 = arith.addf %47, %50 : vector<16x128xf32>
    %52 = vector.extract_strided_slice %28 {offsets = [0, 9], sizes = [16, 128], strides = [1, 1]} : vector<16x256xf32> to vector<16x128xf32>
    %cst_14 = arith.constant 0.00443304796 : f32
    %53 = vector.broadcast %cst_14 : f32 to vector<16x128xf32>
    %54 = arith.mulf %53, %52 : vector<16x128xf32>
    %55 = arith.addf %51, %54 : vector<16x128xf32>
    %c0_15 = arith.constant 0 : index
    %c0_16 = arith.constant 0 : index
    %c0_17 = arith.constant 0 : index
    %c0_18 = arith.constant 0 : index
    %56 = vector.load %arg2[%c0_15, %c0_16, %c0_17, %c0_18] : memref<1x3x16x128xf32, #tpu.memory_space<vmem>>, vector<1x1x16x128xf32>
    %57 = vector.shape_cast %56 : vector<1x1x16x128xf32> to vector<16x128xf32>
    %58 = vector.shape_cast %55 : vector<16x128xf32> to vector<1x1x16x128xf32>
    tpu.vector_store %arg2[%c0_15, %c0_16, %c0_17, %c0_18], %58 {strides = array<i32>} : memref<1x3x16x128xf32, #tpu.memory_space<vmem>>, vector<1x1x16x128xf32>,
    %59 = vector.extract_strided_slice %1 {offsets = [2, 0], sizes = [16, 256], strides = [1, 1]} : vector<32x256xf32> to vector<16x256xf32>
    %cst_19 = arith.constant 0.0110020041 : f32
    %60 = vector.broadcast %cst_19 : f32 to vector<16x256xf32>
    %61 = arith.mulf %60, %59 : vector<16x256xf32>
    %62 = vector.extract_strided_slice %1 {offsets = [3, 0], sizes = [16, 256], strides = [1, 1]} : vector<32x256xf32> to vector<16x256xf32>
    %cst_20 = arith.constant 0.043175146 : f32
    %63 = vector.broadcast %cst_20 : f32 to vector<16x256xf32>
    %64 = arith.mulf %63, %62 : vector<16x256xf32>
    %65 = arith.addf %61, %64 : vector<16x256xf32>
    %66 = vector.extract_strided_slice %1 {offsets = [4, 0], sizes = [16, 256], strides = [1, 1]} : vector<32x256xf32> to vector<16x256xf32>
    %cst_21 = arith.constant 0.114643522 : f32
    %67 = vector.broadcast %cst_21 : f32 to vector<16x256xf32>
    %68 = arith.mulf %67, %66 : vector<16x256xf32>
    %69 = arith.addf %65, %68 : vector<16x256xf32>
    %70 = vector.extract_strided_slice %1 {offsets = [5, 0], sizes = [16, 256], strides = [1, 1]} : vector<32x256xf32> to vector<16x256xf32>
    %cst_22 = arith.constant 0.205977097 : f32
    %71 = vector.broadcast %cst_22 : f32 to vector<16x256xf32>
    %72 = arith.mulf %71, %70 : vector<16x256xf32>
    %73 = arith.addf %69, %72 : vector<16x256xf32>
    %74 = vector.extract_strided_slice %1 {offsets = [6, 0], sizes = [16, 256], strides = [1, 1]} : vector<32x256xf32> to vector<16x256xf32>
    %cst_23 = arith.constant 0.250404477 : f32
    %75 = vector.broadcast %cst_23 : f32 to vector<16x256xf32>
    %76 = arith.mulf %75, %74 : vector<16x256xf32>
    %77 = arith.addf %73, %76 : vector<16x256xf32>
    %78 = vector.extract_strided_slice %1 {offsets = [7, 0], sizes = [16, 256], strides = [1, 1]} : vector<32x256xf32> to vector<16x256xf32>
    %cst_24 = arith.constant 0.205977097 : f32
    %79 = vector.broadcast %cst_24 : f32 to vector<16x256xf32>
    %80 = arith.mulf %79, %78 : vector<16x256xf32>
    %81 = arith.addf %77, %80 : vector<16x256xf32>
    %82 = vector.extract_strided_slice %1 {offsets = [8, 0], sizes = [16, 256], strides = [1, 1]} : vector<32x256xf32> to vector<16x256xf32>
    %cst_25 = arith.constant 0.114643522 : f32
    %83 = vector.broadcast %cst_25 : f32 to vector<16x256xf32>
    %84 = arith.mulf %83, %82 : vector<16x256xf32>
    %85 = arith.addf %81, %84 : vector<16x256xf32>
    %86 = vector.extract_strided_slice %1 {offsets = [9, 0], sizes = [16, 256], strides = [1, 1]} : vector<32x256xf32> to vector<16x256xf32>
    %cst_26 = arith.constant 0.043175146 : f32
    %87 = vector.broadcast %cst_26 : f32 to vector<16x256xf32>
    %88 = arith.mulf %87, %86 : vector<16x256xf32>
    %89 = arith.addf %85, %88 : vector<16x256xf32>
    %90 = vector.extract_strided_slice %1 {offsets = [10, 0], sizes = [16, 256], strides = [1, 1]} : vector<32x256xf32> to vector<16x256xf32>
    %cst_27 = arith.constant 0.0110020041 : f32
    %91 = vector.broadcast %cst_27 : f32 to vector<16x256xf32>
    %92 = arith.mulf %91, %90 : vector<16x256xf32>
    %93 = arith.addf %89, %92 : vector<16x256xf32>
    %94 = vector.extract_strided_slice %93 {offsets = [0, 2], sizes = [16, 128], strides = [1, 1]} : vector<16x256xf32> to vector<16x128xf32>
    %cst_28 = arith.constant 0.0110020041 : f32
    %95 = vector.broadcast %cst_28 : f32 to vector<16x128xf32>
    %96 = arith.mulf %95, %94 : vector<16x128xf32>
    %97 = vector.extract_strided_slice %93 {offsets = [0, 3], sizes = [16, 128], strides = [1, 1]} : vector<16x256xf32> to vector<16x128xf32>
    %cst_29 = arith.constant 0.043175146 : f32
    %98 = vector.broadcast %cst_29 : f32 to vector<16x128xf32>
    %99 = arith.mulf %98, %97 : vector<16x128xf32>
    %100 = arith.addf %96, %99 : vector<16x128xf32>
    %101 = vector.extract_strided_slice %93 {offsets = [0, 4], sizes = [16, 128], strides = [1, 1]} : vector<16x256xf32> to vector<16x128xf32>
    %cst_30 = arith.constant 0.114643522 : f32
    %102 = vector.broadcast %cst_30 : f32 to vector<16x128xf32>
    %103 = arith.mulf %102, %101 : vector<16x128xf32>
    %104 = arith.addf %100, %103 : vector<16x128xf32>
    %105 = vector.extract_strided_slice %93 {offsets = [0, 5], sizes = [16, 128], strides = [1, 1]} : vector<16x256xf32> to vector<16x128xf32>
    %cst_31 = arith.constant 0.205977097 : f32
    %106 = vector.broadcast %cst_31 : f32 to vector<16x128xf32>
    %107 = arith.mulf %106, %105 : vector<16x128xf32>
    %108 = arith.addf %104, %107 : vector<16x128xf32>
    %109 = vector.extract_strided_slice %93 {offsets = [0, 6], sizes = [16, 128], strides = [1, 1]} : vector<16x256xf32> to vector<16x128xf32>
    %cst_32 = arith.constant 0.250404477 : f32
    %110 = vector.broadcast %cst_32 : f32 to vector<16x128xf32>
    %111 = arith.mulf %110, %109 : vector<16x128xf32>
    %112 = arith.addf %108, %111 : vector<16x128xf32>
    %113 = vector.extract_strided_slice %93 {offsets = [0, 7], sizes = [16, 128], strides = [1, 1]} : vector<16x256xf32> to vector<16x128xf32>
    %cst_33 = arith.constant 0.205977097 : f32
    %114 = vector.broadcast %cst_33 : f32 to vector<16x128xf32>
    %115 = arith.mulf %114, %113 : vector<16x128xf32>
    %116 = arith.addf %112, %115 : vector<16x128xf32>
    %117 = vector.extract_strided_slice %93 {offsets = [0, 8], sizes = [16, 128], strides = [1, 1]} : vector<16x256xf32> to vector<16x128xf32>
    %cst_34 = arith.constant 0.114643522 : f32
    %118 = vector.broadcast %cst_34 : f32 to vector<16x128xf32>
    %119 = arith.mulf %118, %117 : vector<16x128xf32>
    %120 = arith.addf %116, %119 : vector<16x128xf32>
    %121 = vector.extract_strided_slice %93 {offsets = [0, 9], sizes = [16, 128], strides = [1, 1]} : vector<16x256xf32> to vector<16x128xf32>
    %cst_35 = arith.constant 0.043175146 : f32
    %122 = vector.broadcast %cst_35 : f32 to vector<16x128xf32>
    %123 = arith.mulf %122, %121 : vector<16x128xf32>
    %124 = arith.addf %120, %123 : vector<16x128xf32>
    %125 = vector.extract_strided_slice %93 {offsets = [0, 10], sizes = [16, 128], strides = [1, 1]} : vector<16x256xf32> to vector<16x128xf32>
    %cst_36 = arith.constant 0.0110020041 : f32
    %126 = vector.broadcast %cst_36 : f32 to vector<16x128xf32>
    %127 = arith.mulf %126, %125 : vector<16x128xf32>
    %128 = arith.addf %124, %127 : vector<16x128xf32>
    %c0_37 = arith.constant 0 : index
    %c1 = arith.constant 1 : index
    %c0_38 = arith.constant 0 : index
    %c0_39 = arith.constant 0 : index
    %129 = vector.load %arg2[%c0_37, %c1, %c0_38, %c0_39] : memref<1x3x16x128xf32, #tpu.memory_space<vmem>>, vector<1x1x16x128xf32>
    %130 = vector.shape_cast %129 : vector<1x1x16x128xf32> to vector<16x128xf32>
    %131 = vector.shape_cast %128 : vector<16x128xf32> to vector<1x1x16x128xf32>
    tpu.vector_store %arg2[%c0_37, %c1, %c0_38, %c0_39], %131 {strides = array<i32>} : memref<1x3x16x128xf32, #tpu.memory_space<vmem>>, vector<1x1x16x128xf32>,
    %132 = vector.extract_strided_slice %1 {offsets = [0, 0], sizes = [16, 256], strides = [1, 1]} : vector<32x256xf32> to vector<16x256xf32>
    %cst_40 = arith.constant 0.00221819594 : f32
    %133 = vector.broadcast %cst_40 : f32 to vector<16x256xf32>
    %134 = arith.mulf %133, %132 : vector<16x256xf32>
    %135 = vector.extract_strided_slice %1 {offsets = [1, 0], sizes = [16, 256], strides = [1, 1]} : vector<32x256xf32> to vector<16x256xf32>
    %cst_41 = arith.constant 0.00877313502 : f32
    %136 = vector.broadcast %cst_41 : f32 to vector<16x256xf32>
    %137 = arith.mulf %136, %135 : vector<16x256xf32>
    %138 = arith.addf %134, %137 : vector<16x256xf32>
    %139 = vector.extract_strided_slice %1 {offsets = [2, 0], sizes = [16, 256], strides = [1, 1]} : vector<32x256xf32> to vector<16x256xf32>
    %cst_42 = arith.constant 0.0270231571 : f32
    %140 = vector.broadcast %cst_42 : f32 to vector<16x256xf32>
    %141 = arith.mulf %140, %139 : vector<16x256xf32>
    %142 = arith.addf %138, %141 : vector<16x256xf32>
    %143 = vector.extract_strided_slice %1 {offsets = [3, 0], sizes = [16, 256], strides = [1, 1]} : vector<32x256xf32> to vector<16x256xf32>
    %cst_43 = arith.constant 0.0648251846 : f32
    %144 = vector.broadcast %cst_43 : f32 to vector<16x256xf32>
    %145 = arith.mulf %144, %143 : vector<16x256xf32>
    %146 = arith.addf %142, %145 : vector<16x256xf32>
    %147 = vector.extract_strided_slice %1 {offsets = [4, 0], sizes = [16, 256], strides = [1, 1]} : vector<32x256xf32> to vector<16x256xf32>
    %cst_44 = arith.constant 0.121109389 : f32
    %148 = vector.broadcast %cst_44 : f32 to vector<16x256xf32>
    %149 = arith.mulf %148, %147 : vector<16x256xf32>
    %150 = arith.addf %146, %149 : vector<16x256xf32>
    %151 = vector.extract_strided_slice %1 {offsets = [5, 0], sizes = [16, 256], strides = [1, 1]} : vector<32x256xf32> to vector<16x256xf32>
    %cst_45 = arith.constant 0.176213115 : f32
    %152 = vector.broadcast %cst_45 : f32 to vector<16x256xf32>
    %153 = arith.mulf %152, %151 : vector<16x256xf32>
    %154 = arith.addf %150, %153 : vector<16x256xf32>
    %155 = vector.extract_strided_slice %1 {offsets = [6, 0], sizes = [16, 256], strides = [1, 1]} : vector<32x256xf32> to vector<16x256xf32>
    %cst_46 = arith.constant 0.199675635 : f32
    %156 = vector.broadcast %cst_46 : f32 to vector<16x256xf32>
    %157 = arith.mulf %156, %155 : vector<16x256xf32>
    %158 = arith.addf %154, %157 : vector<16x256xf32>
    %159 = vector.extract_strided_slice %1 {offsets = [7, 0], sizes = [16, 256], strides = [1, 1]} : vector<32x256xf32> to vector<16x256xf32>
    %cst_47 = arith.constant 0.176213115 : f32
    %160 = vector.broadcast %cst_47 : f32 to vector<16x256xf32>
    %161 = arith.mulf %160, %159 : vector<16x256xf32>
    %162 = arith.addf %158, %161 : vector<16x256xf32>
    %163 = vector.extract_strided_slice %1 {offsets = [8, 0], sizes = [16, 256], strides = [1, 1]} : vector<32x256xf32> to vector<16x256xf32>
    %cst_48 = arith.constant 0.121109389 : f32
    %164 = vector.broadcast %cst_48 : f32 to vector<16x256xf32>
    %165 = arith.mulf %164, %163 : vector<16x256xf32>
    %166 = arith.addf %162, %165 : vector<16x256xf32>
    %167 = vector.extract_strided_slice %1 {offsets = [9, 0], sizes = [16, 256], strides = [1, 1]} : vector<32x256xf32> to vector<16x256xf32>
    %cst_49 = arith.constant 0.0648251846 : f32
    %168 = vector.broadcast %cst_49 : f32 to vector<16x256xf32>
    %169 = arith.mulf %168, %167 : vector<16x256xf32>
    %170 = arith.addf %166, %169 : vector<16x256xf32>
    %171 = vector.extract_strided_slice %1 {offsets = [10, 0], sizes = [16, 256], strides = [1, 1]} : vector<32x256xf32> to vector<16x256xf32>
    %cst_50 = arith.constant 0.0270231571 : f32
    %172 = vector.broadcast %cst_50 : f32 to vector<16x256xf32>
    %173 = arith.mulf %172, %171 : vector<16x256xf32>
    %174 = arith.addf %170, %173 : vector<16x256xf32>
    %175 = vector.extract_strided_slice %1 {offsets = [11, 0], sizes = [16, 256], strides = [1, 1]} : vector<32x256xf32> to vector<16x256xf32>
    %cst_51 = arith.constant 0.00877313502 : f32
    %176 = vector.broadcast %cst_51 : f32 to vector<16x256xf32>
    %177 = arith.mulf %176, %175 : vector<16x256xf32>
    %178 = arith.addf %174, %177 : vector<16x256xf32>
    %179 = vector.extract_strided_slice %1 {offsets = [12, 0], sizes = [16, 256], strides = [1, 1]} : vector<32x256xf32> to vector<16x256xf32>
    %cst_52 = arith.constant 0.00221819594 : f32
    %180 = vector.broadcast %cst_52 : f32 to vector<16x256xf32>
    %181 = arith.mulf %180, %179 : vector<16x256xf32>
    %182 = arith.addf %178, %181 : vector<16x256xf32>
    %183 = vector.extract_strided_slice %182 {offsets = [0, 0], sizes = [16, 128], strides = [1, 1]} : vector<16x256xf32> to vector<16x128xf32>
    %cst_53 = arith.constant 0.00221819594 : f32
    %184 = vector.broadcast %cst_53 : f32 to vector<16x128xf32>
    %185 = arith.mulf %184, %183 : vector<16x128xf32>
    %186 = vector.extract_strided_slice %182 {offsets = [0, 1], sizes = [16, 128], strides = [1, 1]} : vector<16x256xf32> to vector<16x128xf32>
    %cst_54 = arith.constant 0.00877313502 : f32
    %187 = vector.broadcast %cst_54 : f32 to vector<16x128xf32>
    %188 = arith.mulf %187, %186 : vector<16x128xf32>
    %189 = arith.addf %185, %188 : vector<16x128xf32>
    %190 = vector.extract_strided_slice %182 {offsets = [0, 2], sizes = [16, 128], strides = [1, 1]} : vector<16x256xf32> to vector<16x128xf32>
    %cst_55 = arith.constant 0.0270231571 : f32
    %191 = vector.broadcast %cst_55 : f32 to vector<16x128xf32>
    %192 = arith.mulf %191, %190 : vector<16x128xf32>
    %193 = arith.addf %189, %192 : vector<16x128xf32>
    %194 = vector.extract_strided_slice %182 {offsets = [0, 3], sizes = [16, 128], strides = [1, 1]} : vector<16x256xf32> to vector<16x128xf32>
    %cst_56 = arith.constant 0.0648251846 : f32
    %195 = vector.broadcast %cst_56 : f32 to vector<16x128xf32>
    %196 = arith.mulf %195, %194 : vector<16x128xf32>
    %197 = arith.addf %193, %196 : vector<16x128xf32>
    %198 = vector.extract_strided_slice %182 {offsets = [0, 4], sizes = [16, 128], strides = [1, 1]} : vector<16x256xf32> to vector<16x128xf32>
    %cst_57 = arith.constant 0.121109389 : f32
    %199 = vector.broadcast %cst_57 : f32 to vector<16x128xf32>
    %200 = arith.mulf %199, %198 : vector<16x128xf32>
    %201 = arith.addf %197, %200 : vector<16x128xf32>
    %202 = vector.extract_strided_slice %182 {offsets = [0, 5], sizes = [16, 128], strides = [1, 1]} : vector<16x256xf32> to vector<16x128xf32>
    %cst_58 = arith.constant 0.176213115 : f32
    %203 = vector.broadcast %cst_58 : f32 to vector<16x128xf32>
    %204 = arith.mulf %203, %202 : vector<16x128xf32>
    %205 = arith.addf %201, %204 : vector<16x128xf32>
    %206 = vector.extract_strided_slice %182 {offsets = [0, 6], sizes = [16, 128], strides = [1, 1]} : vector<16x256xf32> to vector<16x128xf32>
    %cst_59 = arith.constant 0.199675635 : f32
    %207 = vector.broadcast %cst_59 : f32 to vector<16x128xf32>
    %208 = arith.mulf %207, %206 : vector<16x128xf32>
    %209 = arith.addf %205, %208 : vector<16x128xf32>
    %210 = vector.extract_strided_slice %182 {offsets = [0, 7], sizes = [16, 128], strides = [1, 1]} : vector<16x256xf32> to vector<16x128xf32>
    %cst_60 = arith.constant 0.176213115 : f32
    %211 = vector.broadcast %cst_60 : f32 to vector<16x128xf32>
    %212 = arith.mulf %211, %210 : vector<16x128xf32>
    %213 = arith.addf %209, %212 : vector<16x128xf32>
    %214 = vector.extract_strided_slice %182 {offsets = [0, 8], sizes = [16, 128], strides = [1, 1]} : vector<16x256xf32> to vector<16x128xf32>
    %cst_61 = arith.constant 0.121109389 : f32
    %215 = vector.broadcast %cst_61 : f32 to vector<16x128xf32>
    %216 = arith.mulf %215, %214 : vector<16x128xf32>
    %217 = arith.addf %213, %216 : vector<16x128xf32>
    %218 = vector.extract_strided_slice %182 {offsets = [0, 9], sizes = [16, 128], strides = [1, 1]} : vector<16x256xf32> to vector<16x128xf32>
    %cst_62 = arith.constant 0.0648251846 : f32
    %219 = vector.broadcast %cst_62 : f32 to vector<16x128xf32>
    %220 = arith.mulf %219, %218 : vector<16x128xf32>
    %221 = arith.addf %217, %220 : vector<16x128xf32>
    %222 = vector.extract_strided_slice %182 {offsets = [0, 10], sizes = [16, 128], strides = [1, 1]} : vector<16x256xf32> to vector<16x128xf32>
    %cst_63 = arith.constant 0.0270231571 : f32
    %223 = vector.broadcast %cst_63 : f32 to vector<16x128xf32>
    %224 = arith.mulf %223, %222 : vector<16x128xf32>
    %225 = arith.addf %221, %224 : vector<16x128xf32>
    %226 = vector.extract_strided_slice %182 {offsets = [0, 11], sizes = [16, 128], strides = [1, 1]} : vector<16x256xf32> to vector<16x128xf32>
    %cst_64 = arith.constant 0.00877313502 : f32
    %227 = vector.broadcast %cst_64 : f32 to vector<16x128xf32>
    %228 = arith.mulf %227, %226 : vector<16x128xf32>
    %229 = arith.addf %225, %228 : vector<16x128xf32>
    %230 = vector.extract_strided_slice %182 {offsets = [0, 12], sizes = [16, 128], strides = [1, 1]} : vector<16x256xf32> to vector<16x128xf32>
    %cst_65 = arith.constant 0.00221819594 : f32
    %231 = vector.broadcast %cst_65 : f32 to vector<16x128xf32>
    %232 = arith.mulf %231, %230 : vector<16x128xf32>
    %233 = arith.addf %229, %232 : vector<16x128xf32>
    %c0_66 = arith.constant 0 : index
    %c2 = arith.constant 2 : index
    %c0_67 = arith.constant 0 : index
    %c0_68 = arith.constant 0 : index
    %234 = vector.load %arg2[%c0_66, %c2, %c0_67, %c0_68] : memref<1x3x16x128xf32, #tpu.memory_space<vmem>>, vector<1x1x16x128xf32>
    %235 = vector.shape_cast %234 : vector<1x1x16x128xf32> to vector<16x128xf32>
    %236 = vector.shape_cast %233 : vector<16x128xf32> to vector<1x1x16x128xf32>
    tpu.vector_store %arg2[%c0_66, %c2, %c0_67, %c0_68], %236 {strides = array<i32>} : memref<1x3x16x128xf32, #tpu.memory_space<vmem>>, vector<1x1x16x128xf32>,
    return
  }
  func.func @transform_0(%arg0: i32) -> (i32, i32, i32) {
    %c0_i32 = arith.constant 0 : i32
    %c0_i32_0 = arith.constant 0 : i32
    %c0_i32_1 = arith.constant 0 : i32
    return %arg0, %c0_i32, %c0_i32_0 : i32, i32, i32
  }
  func.func @transform_1(%arg0: i32) -> (i32, i32, i32, i32) {
    %c0_i32 = arith.constant 0 : i32
    %c0_i32_0 = arith.constant 0 : i32
    %c0_i32_1 = arith.constant 0 : i32
    %c0_i32_2 = arith.constant 0 : i32
    return %arg0, %c0_i32, %c0_i32_0, %c0_i32_1 : i32, i32, i32, i32
  }
}

</mosaic_0001>

<llo_original>
// kernel: tpu_custom_call.1
$region0: #{tpu_custom_call.1}
  #allocation0 [shape = 'u32[]', space=smem, size = 0x4, offset = 0x4, fixed_abs, tag = 'smem constant byte address 0x4 - core index']
  #allocation1 [shape = 'u32[144,128]{1,0:T(1,128)}', space=vmem, size = 0x12000, scoped, tag = 'internal scratch']
  %s0 = inlined_call_operand.hbm [shape: f32[2,32,256], index: 0, kind: input, shape index: {}]
  %s1 = inlined_call_operand.hbm [shape: f32[2,3,16,128], index: 1, kind: output, shape index: {}]
  %s2 = sld [smem:[#allocation0]]
  $region41: #{tpu_custom_call.1} parent=0
    _
  %s4 = ssub.s32 1, %s2
  %s5 = scalar_select 0, %s4, %s2
  $region1: #{tpu_custom_call.1} parent=0
    #allocation2 [shape = 'u8[65536]{0}', space=vmem, size = 0x10000, scoped, tag = 'input window, operand 0']
    #allocation3 [shape = 's32[2]{0}', space=sflag, size = 0x8, scoped, tag = 'scoped memory for tpu_custom_call.1']
    #allocation4 [shape = 's32[2]{0}', space=sflag, size = 0x8, scoped, tag = 'scoped memory for tpu_custom_call.1']
    #allocation5 [shape = 'u8[49152]{0}', space=vmem, size = 0xc000, scoped, tag = 'output window, operand 0']
    %6 = vsyncpa [#allocation3], 0
    %s7 = scalar_lea.sflag [#allocation3], 1
    %8 = vsyncpa %s7, 0
    %9 = vsyncpa [#allocation4], 0
    %s10 = scalar_lea.sflag [#allocation4], 1
    %11 = vsyncpa %s10, 0
    loop: start=0, step=1, limit=4
    $region2: #{tpu_custom_call.1} parent=1 // loop_pre_header
      _
    $region3: #{tpu_custom_call.1} parent=1 // loop_header
      %s13 = sphi 0, %s17
      %p14 = scmp.ge.s32.totalorder %s13, 4
      %s23 = sphi 0, %s25
      %s26 = sphi 0, %s23
      %s27 = sphi 0, %s26
      %s43 = sphi 0, %s27
      %s49 = sphi 0, %s51
      %s52 = sphi 0, %s49
      %s53 = sphi 0, %s52
      %s69 = sphi 0, %s53
    $region4: #{tpu_custom_call.1} parent=1 // loop_header_branch
      %16 = sbr.rel (%p14) target = $region8
    $region5: #{tpu_custom_call.1} parent=1 // loop_body
      %s18 = ssub.s32 %s13, 1
      %s19 = ssub.s32 %s13, 2
      %s20 = sadd.s32 %s13, 1
      %s21 = ssub.s32 %s13, %s20
      %p22 = scmp.eq.s32.totalorder %s21, 0
      %s24 = sadd.s32 %s23, 1
      %s25 = scalar_select %p22, %s23, %s24
      %p28 = pneg %p22
      %p29 = scmp.eq.s32.totalorder %s13, 1
      %p30 = por %p28, %p29
      %p31 = scmp.ne.s32.totalorder %s23, %s26
      %p32 = scmp.eq.s32.totalorder %s13, 0
      %p33 = por %p31, %p32
      %p34 = scmp.ne.s32.totalorder %s23, %s26
      %p35 = scmp.eq.s32.totalorder %s18, 1
      %p36 = por %p34, %p35
      %p37 = scmp.ne.s32.totalorder %s26, %s27
      %p38 = scmp.eq.s32.totalorder %s18, 0
      %p39 = por %p37, %p38
      %p40 = scmp.ne.s32.totalorder %s26, %s27
      %p41 = scmp.eq.s32.totalorder %s19, 1
      %p42 = por %p40, %p41
      %p44 = scmp.ne.s32.totalorder %s27, %s43
      %p45 = scmp.eq.s32.totalorder %s19, 0
      %p46 = por %p44, %p45
      %s47 = ssub.s32 %s13, %s20
      %p48 = scmp.eq.s32.totalorder %s47, 0
      %s50 = sadd.s32 %s49, 1
      %s51 = scalar_select %p48, %s49, %s50
      %p54 = pneg %p48
      %p55 = scmp.eq.s32.totalorder %s13, 1
      %p56 = por %p54, %p55
      %p57 = scmp.ne.s32.totalorder %s49, %s52
      %p58 = scmp.eq.s32.totalorder %s13, 0
      %p59 = por %p57, %p58
      %p60 = scmp.ne.s32.totalorder %s49, %s52
      %p61 = scmp.eq.s32.totalorder %s18, 1
      %p62 = por %p60, %p61
      %p63 = scmp.ne.s32.totalorder %s52, %s53
      %p64 = scmp.eq.s32.totalorder %s18, 0
      %p65 = por %p63, %p64
      %p66 = scmp.ne.s32.totalorder %s52, %s53
      %p67 = scmp.eq.s32.totalorder %s19, 1
      %p68 = por %p66, %p67
      %p70 = scmp.ne.s32.totalorder %s53, %s69
      %p71 = scmp.eq.s32.totalorder %s19, 0
      %p72 = por %p70, %p71
      %p73 = scmp.le.s32.totalorder 1, %s13
      %p74 = scmp.lt.s32.totalorder %s13, 3
      %p75 = pnand %p73, %p74
      %p76 = pneg %p75
      // Predicated region
      $region9: #{tpu_custom_call.1} parent=5 // pred_check
        _
      $region10: #{tpu_custom_call.1} parent=5 // pred_check_branch
        %78 = sbr.rel (%p75) target = $region12
      $region11: #{tpu_custom_call.1} parent=5 // pred_region
        %s79 = ssub.s32 %s13, 1
      $region12: #{tpu_custom_call.1} parent=5 // pred_fallthru
        _
      %p80 = scmp.lt.s32.totalorder %s13, 2
      // Predicated region
      $region13: #{tpu_custom_call.1} parent=5 // pred_check
        %p81 = pneg %p80
      $region14: #{tpu_custom_call.1} parent=5 // pred_check_branch
        %83 = sbr.rel (%p81) target = $region16
      $region15: #{tpu_custom_call.1} parent=5 // pred_region
        // Predicated region
        $region17: #{tpu_custom_call.1} parent=15 // pred_check
          %p84 = pneg %p33
        $region18: #{tpu_custom_call.1} parent=15 // pred_check_branch
          %86 = sbr.rel (%p84) target = $region20
        $region19: #{tpu_custom_call.1} parent=15 // pred_region
          %s87 = sand.u32 %s23, 1
          %s88 = scalar_lea.sflag [#allocation3], %s87
          %s89 = sand.u32 %s23, 1
          %s90 = smul.addr %s89, 64
          %s91 = scalar_lea.vmem [#allocation2], %s90
          %s93 = ssub.s32 1024, 1024
          %94 = vsyncadd %s88, %s93
          %s95 = smul.addr %s13, 8
          %s96 = smul.addr %s95, 128
          %s97 = scalar_lea.hbm %s0, %s96
          %s98 = sshll.u32 %s91, 4
          %s99 = int_to_ptr.vmem [resolvable:$true] %s98
          %104 = dma.hbm_to_vmem [thread:$0]  %s97, 1024, %s99, %s88, 256, 256, 16
        $region20: #{tpu_custom_call.1} parent=15 // pred_fallthru
          _
      $region16: #{tpu_custom_call.1} parent=5 // pred_fallthru
        _
      %p105 = scmp.le.s32.totalorder 1, %s13
      %p106 = scmp.lt.s32.totalorder %s13, 3
      %p107 = pnand %p105, %p106
      %p108 = pneg %p107
      // Predicated region
      $region21: #{tpu_custom_call.1} parent=5 // pred_check
        _
      $region22: #{tpu_custom_call.1} parent=5 // pred_check_branch
        %110 = sbr.rel (%p107) target = $region24
      $region23: #{tpu_custom_call.1} parent=5 // pred_region
        %s111 = ssub.s32 %s13, 1
        %s112 = sand.u32 %s26, 1
        %s113 = scalar_lea.sflag [#allocation3], %s112
        %s114 = sand.u32 %s26, 1
        %s115 = smul.addr %s114, 64
        %s116 = scalar_lea.vmem [#allocation2], %s115
        // Predicated region
        $region25: #{tpu_custom_call.1} parent=23 // pred_check
          %p117 = pneg %p39
        $region26: #{tpu_custom_call.1} parent=23 // pred_check_branch
          %119 = sbr.rel (%p117) target = $region28
        $region27: #{tpu_custom_call.1} parent=23 // pred_region
          %120 = dma.done %s113, 1024
        $region28: #{tpu_custom_call.1} parent=23 // pred_fallthru
          _
        %s121 = sand.u32 %s26, 1
        %s122 = scalar_lea.sflag [#allocation3], %s121
        %s123 = sand.u32 %s26, 1
        %s124 = smul.addr %s123, 64
        %s125 = scalar_lea.vmem [#allocation2], %s124
        %p126 = pneg %p39
        %p127 = pneg %p36
        %p128 = pneg %p65
        %p129 = pneg %p62
        %s130 = sand.u32 %s52, 1
        %s131 = scalar_lea.sflag [#allocation4], %s130
        %s132 = sand.u32 %s52, 1
        %s133 = smul.addr %s132, 48
        %s134 = scalar_lea.vmem [#allocation5], %s133
        %v135 = vld [vmem:[%s116] sm:$0xff]
        %v136 = vld [vmem:[%s116 + $0x8] sm:$0xff]
        %v137 = vld [vmem:[%s116 + $0x10] sm:$0xff]
        %v138 = vld [vmem:[%s116 + $0x18] sm:$0xff]
        %v139 = vld [vmem:[%s116 + $0x20] sm:$0xff]
        %v140 = vld [vmem:[%s116 + $0x28] sm:$0xff]
        %v141 = vld [vmem:[%s116 + $0x30] sm:$0xff]
        %v142 = vld [vmem:[%s116 + $0x38] sm:$0xff]
        %v143 = vmul.f32 %v135, 0.004433048
        %v144 = vmul.f32 %v136, 0.004433048
        %v145 = vmul.f32 %v137, 0.004433048
        %v146 = vmul.f32 %v138, 0.004433048
        %v147 = vmul.f32 %v139, 0.004433048
        %v148 = vmul.f32 %v140, 0.004433048
        %v149 = vmul.f32 %v135, 0.054005582
        %v150 = vmul.f32 %v136, 0.054005582
        %v151 = vmul.f32 %v137, 0.054005582
        %v152 = vmul.f32 %v138, 0.054005582
        %v153 = vmul.f32 %v139, 0.054005582
        %v154 = vmul.f32 %v140, 0.054005582
        %vm161 = vcmask 1046528
        %v162 = vrot.slane %v149, 1
        %v163 = vrot.slane %v151, 1
        %v164 = vsel %vm161, %v162, %v163
        %v165 = vrot.slane %v150, 1
        %v166 = vrot.slane %v152, 1
        %v167 = vsel %vm161, %v165, %v166
        %v168 = vrot.slane %v153, 1
        %v169 = vsel %vm161, %v163, %v168
        %v170 = vrot.slane %v154, 1
        %v171 = vsel %vm161, %v166, %v170
        %v178 = vadd.f32 %v143, %v164
        %v179 = vadd.f32 %v144, %v167
        %v180 = vadd.f32 %v145, %v169
        %v181 = vadd.f32 %v146, %v171
        %v182 = vadd.f32 %v147, %v168
        %v183 = vadd.f32 %v148, %v170
        %v184 = vmul.f32 %v135, 0.24203622
        %v185 = vmul.f32 %v136, 0.24203622
        %v186 = vmul.f32 %v137, 0.24203622
        %v187 = vmul.f32 %v138, 0.24203622
        %v188 = vmul.f32 %v139, 0.24203622
        %v189 = vmul.f32 %v140, 0.24203622
        %vm196 = vcmask 1045504
        %v197 = vrot.slane %v184, 2
        %v198 = vrot.slane %v186, 2
        %v199 = vsel %vm196, %v197, %v198
        %v200 = vrot.slane %v185, 2
        %v201 = vrot.slane %v187, 2
        %v202 = vsel %vm196, %v200, %v201
        %v203 = vrot.slane %v188, 2
        %v204 = vsel %vm196, %v198, %v203
        %v205 = vrot.slane %v189, 2
        %v206 = vsel %vm196, %v201, %v205
        %v213 = vadd.f32 %v178, %v199
        %v214 = vadd.f32 %v179, %v202
        %v215 = vadd.f32 %v180, %v204
        %v216 = vadd.f32 %v181, %v206
        %v217 = vadd.f32 %v182, %v203
        %v218 = vadd.f32 %v183, %v205
        %v219 = vmul.f32 %v135, 0.39905027
        %v220 = vmul.f32 %v136, 0.39905027
        %v221 = vmul.f32 %v137, 0.39905027
        %v222 = vmul.f32 %v138, 0.39905027
        %v223 = vmul.f32 %v139, 0.39905027
        %v224 = vmul.f32 %v140, 0.39905027
        %vm231 = vcmask 1044480
        %v232 = vrot.slane %v219, 3
        %v233 = vrot.slane %v221, 3
        %v234 = vsel %vm231, %v232, %v233
        %v235 = vrot.slane %v220, 3
        %v236 = vrot.slane %v222, 3
        %v237 = vsel %vm231, %v235, %v236
        %v238 = vrot.slane %v223, 3
        %v239 = vsel %vm231, %v233, %v238
        %v240 = vrot.slane %v224, 3
        %v241 = vsel %vm231, %v236, %v240
        %v248 = vadd.f32 %v213, %v234
        %v249 = vadd.f32 %v214, %v237
        %v250 = vadd.f32 %v215, %v239
        %v251 = vadd.f32 %v216, %v241
        %v252 = vadd.f32 %v217, %v238
        %v253 = vadd.f32 %v218, %v240
        %vm254 = vcmask 1043456
        %v255 = vrot.slane %v184, 4
        %v256 = vrot.slane %v186, 4
        %v257 = vsel %vm254, %v255, %v256
        %v258 = vrot.slane %v185, 4
        %v259 = vrot.slane %v187, 4
        %v260 = vsel %vm254, %v258, %v259
        %v261 = vrot.slane %v188, 4
        %v262 = vsel %vm254, %v256, %v261
        %v263 = vrot.slane %v189, 4
        %v264 = vsel %vm254, %v259, %v263
        %v271 = vadd.f32 %v248, %v257
        %v272 = vadd.f32 %v249, %v260
        %v273 = vadd.f32 %v250, %v262
        %v274 = vadd.f32 %v251, %v264
        %v275 = vadd.f32 %v252, %v261
        %v276 = vadd.f32 %v253, %v263
        %vm277 = vcmask 1042432
        %v278 = vrot.slane %v151, 5
        %v279 = vrot.slane %v152, 5
        %v280 = vrot.slane %v153, 5
        %v281 = vsel %vm277, %v278, %v280
        %v282 = vrot.slane %v154, 5
        %v283 = vsel %vm277, %v279, %v282
        %v290 = vadd.f32 %v271, %v278
        %v291 = vadd.f32 %v272, %v279
        %v292 = vadd.f32 %v273, %v281
        %v293 = vadd.f32 %v274, %v283
        %v294 = vadd.f32 %v275, %v280
        %v295 = vadd.f32 %v276, %v282
        %v296 = vmul.f32 %v141, 0.004433048
        %v297 = vmul.f32 %v142, 0.004433048
        %vm304 = vcmask 1041408
        %v305 = vrot.slane %v145, 6
        %v306 = vrot.slane %v146, 6
        %v307 = vrot.slane %v147, 6
        %v308 = vsel %vm304, %v305, %v307
        %v309 = vrot.slane %v148, 6
        %v310 = vsel %vm304, %v306, %v309
        %v311 = vrot.slane %v296, 6
        %v312 = vsel %vm304, %v307, %v311
        %v313 = vrot.slane %v297, 6
        %v314 = vsel %vm304, %v309, %v313
        %v321 = vadd.f32 %v290, %v305
        %v322 = vadd.f32 %v291, %v306
        %v323 = vadd.f32 %v292, %v308
        %v324 = vadd.f32 %v293, %v310
        %v325 = vadd.f32 %v294, %v312
        %v326 = vadd.f32 %v295, %v314
        %v327 = vmul.f32 %v321, 0.004433048
        %v328 = vmul.f32 %v322, 0.004433048
        %v329 = vmul.f32 %v323, 0.004433048
        %v330 = vmul.f32 %v324, 0.004433048
        %v331 = vmul.f32 %v325, 0.004433048
        %v332 = vmul.f32 %v326, 0.004433048
        %v333 = vmul.f32 %v321, 0.054005582
        %v334 = vmul.f32 %v322, 0.054005582
        %v335 = vmul.f32 %v323, 0.054005582
        %v336 = vmul.f32 %v324, 0.054005582
        %v337 = vmul.f32 %v325, 0.054005582
        %v338 = vmul.f32 %v326, 0.054005582
        %345 = vrot.lane.b32.xlu0 %v333, 127
        %v346 = vpop.permute.xlu0 %345
        %347 = vrot.lane.b32.xlu0 %v334, 127
        %v348 = vpop.permute.xlu0 %347
        %349 = vrot.lane.b32.xlu0 %v335, 127
        %v350 = vpop.permute.xlu0 %349
        %351 = vrot.lane.b32.xlu0 %v336, 127
        %v352 = vpop.permute.xlu0 %351
        %353 = vrot.lane.b32.xlu0 %v337, 127
        %v354 = vpop.permute.xlu0 %353
        %355 = vrot.lane.b32.xlu0 %v338, 127
        %v356 = vpop.permute.xlu0 %355
        %vm357 = vcmask 1039360
        %v358 = vsel %vm357, %v346, %v348
        %v359 = vsel %vm357, %v350, %v352
        %v360 = vsel %vm357, %v354, %v356
        %v367 = vadd.f32 %v327, %v358
        %v368 = vadd.f32 %v328, %v348
        %v369 = vadd.f32 %v329, %v359
        %v370 = vadd.f32 %v330, %v352
        %v371 = vadd.f32 %v331, %v360
        %v372 = vadd.f32 %v332, %v356
        %v373 = vmul.f32 %v321, 0.24203622
        %v374 = vmul.f32 %v322, 0.24203622
        %v375 = vmul.f32 %v323, 0.24203622
        %v376 = vmul.f32 %v324, 0.24203622
        %v377 = vmul.f32 %v325, 0.24203622
        %v378 = vmul.f32 %v326, 0.24203622
        %385 = vrot.lane.b32.xlu0 %v373, 126
        %v386 = vpop.permute.xlu0 %385
        %387 = vrot.lane.b32.xlu0 %v374, 126
        %v388 = vpop.permute.xlu0 %387
        %389 = vrot.lane.b32.xlu0 %v375, 126
        %v390 = vpop.permute.xlu0 %389
        %391 = vrot.lane.b32.xlu0 %v376, 126
        %v392 = vpop.permute.xlu0 %391
        %393 = vrot.lane.b32.xlu0 %v377, 126
        %v394 = vpop.permute.xlu0 %393
        %395 = vrot.lane.b32.xlu0 %v378, 126
        %v396 = vpop.permute.xlu0 %395
        %vm397 = vcmask 1031168
        %v398 = vsel %vm397, %v386, %v388
        %v399 = vsel %vm397, %v390, %v392
        %v400 = vsel %vm397, %v394, %v396
        %v407 = vadd.f32 %v367, %v398
        %v408 = vadd.f32 %v368, %v388
        %v409 = vadd.f32 %v369, %v399
        %v410 = vadd.f32 %v370, %v392
        %v411 = vadd.f32 %v371, %v400
        %v412 = vadd.f32 %v372, %v396
        %v413 = vmul.f32 %v321, 0.39905027
        %v414 = vmul.f32 %v322, 0.39905027
        %v415 = vmul.f32 %v323, 0.39905027
        %v416 = vmul.f32 %v324, 0.39905027
        %v417 = vmul.f32 %v325, 0.39905027
        %v418 = vmul.f32 %v326, 0.39905027
        %425 = vrot.lane.b32.xlu0 %v413, 125
        %v426 = vpop.permute.xlu0 %425
        %427 = vrot.lane.b32.xlu0 %v414, 125
        %v428 = vpop.permute.xlu0 %427
        %429 = vrot.lane.b32.xlu0 %v415, 125
        %v430 = vpop.permute.xlu0 %429
        %431 = vrot.lane.b32.xlu0 %v416, 125
        %v432 = vpop.permute.xlu0 %431
        %433 = vrot.lane.b32.xlu0 %v417, 125
        %v434 = vpop.permute.xlu0 %433
        %435 = vrot.lane.b32.xlu0 %v418, 125
        %v436 = vpop.permute.xlu0 %435
        %vm437 = vcmask 1022976
        %v438 = vsel %vm437, %v426, %v428
        %v439 = vsel %vm437, %v430, %v432
        %v440 = vsel %vm437, %v434, %v436
        %v447 = vadd.f32 %v407, %v438
        %v448 = vadd.f32 %v408, %v428
        %v449 = vadd.f32 %v409, %v439
        %v450 = vadd.f32 %v410, %v432
        %v451 = vadd.f32 %v411, %v440
        %v452 = vadd.f32 %v412, %v436
        %453 = vrot.lane.b32.xlu0 %v373, 124
        %v454 = vpop.permute.xlu0 %453
        %455 = vrot.lane.b32.xlu0 %v374, 124
        %v456 = vpop.permute.xlu0 %455
        %457 = vrot.lane.b32.xlu0 %v375, 124
        %v458 = vpop.permute.xlu0 %457
        %459 = vrot.lane.b32.xlu0 %v376, 124
        %v460 = vpop.permute.xlu0 %459
        %461 = vrot.lane.b32.xlu0 %v377, 124
        %v462 = vpop.permute.xlu0 %461
        %463 = vrot.lane.b32.xlu0 %v378, 124
        %v464 = vpop.permute.xlu0 %463
        %vm465 = vcmask 1014784
        %v466 = vsel %vm465, %v454, %v456
        %v467 = vsel %vm465, %v458, %v460
        %v468 = vsel %vm465, %v462, %v464
        %v475 = vadd.f32 %v447, %v466
        %v476 = vadd.f32 %v448, %v456
        %v477 = vadd.f32 %v449, %v467
        %v478 = vadd.f32 %v450, %v460
        %v479 = vadd.f32 %v451, %v468
        %v480 = vadd.f32 %v452, %v464
        %481 = vrot.lane.b32.xlu0 %v333, 123
        %v482 = vpop.permute.xlu0 %481
        %483 = vrot.lane.b32.xlu0 %v334, 123
        %v484 = vpop.permute.xlu0 %483
        %485 = vrot.lane.b32.xlu0 %v335, 123
        %v486 = vpop.permute.xlu0 %485
        %487 = vrot.lane.b32.xlu0 %v336, 123
        %v488 = vpop.permute.xlu0 %487
        %489 = vrot.lane.b32.xlu0 %v337, 123
        %v490 = vpop.permute.xlu0 %489
        %491 = vrot.lane.b32.xlu0 %v338, 123
        %v492 = vpop.permute.xlu0 %491
        %vm493 = vcmask 1006592
        %v494 = vsel %vm493, %v482, %v484
        %v495 = vsel %vm493, %v486, %v488
        %v496 = vsel %vm493, %v490, %v492
        %v503 = vadd.f32 %v475, %v494
        %v504 = vadd.f32 %v476, %v484
        %v505 = vadd.f32 %v477, %v495
        %v506 = vadd.f32 %v478, %v488
        %v507 = vadd.f32 %v479, %v496
        %v508 = vadd.f32 %v480, %v492
        %515 = vrot.lane.b32.xlu0 %v327, 122
        %v516 = vpop.permute.xlu0 %515
        %517 = vrot.lane.b32.xlu0 %v328, 122
        %v518 = vpop.permute.xlu0 %517
        %519 = vrot.lane.b32.xlu0 %v329, 122
        %v520 = vpop.permute.xlu0 %519
        %521 = vrot.lane.b32.xlu0 %v330, 122
        %v522 = vpop.permute.xlu0 %521
        %523 = vrot.lane.b32.xlu0 %v331, 122
        %v524 = vpop.permute.xlu0 %523
        %525 = vrot.lane.b32.xlu0 %v332, 122
        %v526 = vpop.permute.xlu0 %525
        %vm527 = vcmask 998400
        %v528 = vsel %vm527, %v516, %v518
        %v529 = vsel %vm527, %v520, %v522
        %v530 = vsel %vm527, %v524, %v526
        %v537 = vadd.f32 %v503, %v528
        %v538 = vadd.f32 %v504, %v518
        %v539 = vadd.f32 %v505, %v529
        %v540 = vadd.f32 %v506, %v522
        %v541 = vadd.f32 %v507, %v530
        %v542 = vadd.f32 %v508, %v526
        %549 = vrot.lane.b32.xlu0 %v537, 125
        %v550 = vpop.permute.xlu0 %549
        %551 = vrot.lane.b32.xlu0 %v538, 125
        %v552 = vpop.permute.xlu0 %551
        %553 = vrot.lane.b32.xlu0 %v539, 125
        %v554 = vpop.permute.xlu0 %553
        %555 = vrot.lane.b32.xlu0 %v540, 125
        %v556 = vpop.permute.xlu0 %555
        %557 = vrot.lane.b32.xlu0 %v541, 125
        %v558 = vpop.permute.xlu0 %557
        %559 = vrot.lane.b32.xlu0 %v542, 125
        %v560 = vpop.permute.xlu0 %559
        %v561 = vsel %vm437, %v550, %v552
        %v562 = vsel %vm437, %v554, %v556
        %v563 = vsel %vm437, %v558, %v560
        %567 = vst [vmem:[%s134 - $0x3] sm:$0xf8] %v561
        %568 = vst [vmem:[%s134 + $0x5] sm:$0xff] %v562
        %569 = vst [vmem:[%s134 + $0xd] sm:$0x7] %v563
        %v570 = vmul.f32 %v135, 0.011002004
        %v571 = vmul.f32 %v136, 0.011002004
        %v572 = vmul.f32 %v137, 0.011002004
        %v573 = vmul.f32 %v138, 0.011002004
        %v574 = vmul.f32 %v139, 0.011002004
        %v575 = vmul.f32 %v140, 0.011002004
        %v576 = vmul.f32 %v135, 0.043175146
        %v577 = vmul.f32 %v136, 0.043175146
        %v578 = vmul.f32 %v137, 0.043175146
        %v579 = vmul.f32 %v138, 0.043175146
        %v580 = vmul.f32 %v139, 0.043175146
        %v581 = vmul.f32 %v140, 0.043175146
        %v588 = vrot.slane %v576, 1
        %v589 = vrot.slane %v578, 1
        %v590 = vsel %vm161, %v588, %v589
        %v591 = vrot.slane %v577, 1
        %v592 = vrot.slane %v579, 1
        %v593 = vsel %vm161, %v591, %v592
        %v594 = vrot.slane %v580, 1
        %v595 = vsel %vm161, %v589, %v594
        %v596 = vrot.slane %v581, 1
        %v597 = vsel %vm161, %v592, %v596
        %v604 = vadd.f32 %v570, %v590
        %v605 = vadd.f32 %v571, %v593
        %v606 = vadd.f32 %v572, %v595
        %v607 = vadd.f32 %v573, %v597
        %v608 = vadd.f32 %v574, %v594
        %v609 = vadd.f32 %v575, %v596
        %v610 = vmul.f32 %v135, 0.11464352
        %v611 = vmul.f32 %v136, 0.11464352
        %v612 = vmul.f32 %v137, 0.11464352
        %v613 = vmul.f32 %v138, 0.11464352
        %v614 = vmul.f32 %v139, 0.11464352
        %v615 = vmul.f32 %v140, 0.11464352
        %v622 = vrot.slane %v610, 2
        %v623 = vrot.slane %v612, 2
        %v624 = vsel %vm196, %v622, %v623
        %v625 = vrot.slane %v611, 2
        %v626 = vrot.slane %v613, 2
        %v627 = vsel %vm196, %v625, %v626
        %v628 = vrot.slane %v614, 2
        %v629 = vsel %vm196, %v623, %v628
        %v630 = vrot.slane %v615, 2
        %v631 = vsel %vm196, %v626, %v630
        %v638 = vadd.f32 %v604, %v624
        %v639 = vadd.f32 %v605, %v627
        %v640 = vadd.f32 %v606, %v629
        %v641 = vadd.f32 %v607, %v631
        %v642 = vadd.f32 %v608, %v628
        %v643 = vadd.f32 %v609, %v630
        %v644 = vmul.f32 %v135, 0.2059771
        %v645 = vmul.f32 %v136, 0.2059771
        %v646 = vmul.f32 %v137, 0.2059771
        %v647 = vmul.f32 %v138, 0.2059771
        %v648 = vmul.f32 %v139, 0.2059771
        %v649 = vmul.f32 %v140, 0.2059771
        %v656 = vrot.slane %v644, 3
        %v657 = vrot.slane %v646, 3
        %v658 = vsel %vm231, %v656, %v657
        %v659 = vrot.slane %v645, 3
        %v660 = vrot.slane %v647, 3
        %v661 = vsel %vm231, %v659, %v660
        %v662 = vrot.slane %v648, 3
        %v663 = vsel %vm231, %v657, %v662
        %v664 = vrot.slane %v649, 3
        %v665 = vsel %vm231, %v660, %v664
        %v672 = vadd.f32 %v638, %v658
        %v673 = vadd.f32 %v639, %v661
        %v674 = vadd.f32 %v640, %v663
        %v675 = vadd.f32 %v641, %v665
        %v676 = vadd.f32 %v642, %v662
        %v677 = vadd.f32 %v643, %v664
        %v678 = vmul.f32 %v135, 0.25040448
        %v679 = vmul.f32 %v136, 0.25040448
        %v680 = vmul.f32 %v137, 0.25040448
        %v681 = vmul.f32 %v138, 0.25040448
        %v682 = vmul.f32 %v139, 0.25040448
        %v683 = vmul.f32 %v140, 0.25040448
        %v690 = vrot.slane %v678, 4
        %v691 = vrot.slane %v680, 4
        %v692 = vsel %vm254, %v690, %v691
        %v693 = vrot.slane %v679, 4
        %v694 = vrot.slane %v681, 4
        %v695 = vsel %vm254, %v693, %v694
        %v696 = vrot.slane %v682, 4
        %v697 = vsel %vm254, %v691, %v696
        %v698 = vrot.slane %v683, 4
        %v699 = vsel %vm254, %v694, %v698
        %v706 = vadd.f32 %v672, %v692
        %v707 = vadd.f32 %v673, %v695
        %v708 = vadd.f32 %v674, %v697
        %v709 = vadd.f32 %v675, %v699
        %v710 = vadd.f32 %v676, %v696
        %v711 = vadd.f32 %v677, %v698
        %v712 = vrot.slane %v644, 5
        %v713 = vrot.slane %v646, 5
        %v714 = vsel %vm277, %v712, %v713
        %v715 = vrot.slane %v645, 5
        %v716 = vrot.slane %v647, 5
        %v717 = vsel %vm277, %v715, %v716
        %v718 = vrot.slane %v648, 5
        %v719 = vsel %vm277, %v713, %v718
        %v720 = vrot.slane %v649, 5
        %v721 = vsel %vm277, %v716, %v720
        %v728 = vadd.f32 %v706, %v714
        %v729 = vadd.f32 %v707, %v717
        %v730 = vadd.f32 %v708, %v719
        %v731 = vadd.f32 %v709, %v721
        %v732 = vadd.f32 %v710, %v718
        %v733 = vadd.f32 %v711, %v720
        %v734 = vrot.slane %v612, 6
        %v735 = vrot.slane %v613, 6
        %v736 = vrot.slane %v614, 6
        %v737 = vsel %vm304, %v734, %v736
        %v738 = vrot.slane %v615, 6
        %v739 = vsel %vm304, %v735, %v738
        %v746 = vadd.f32 %v728, %v734
        %v747 = vadd.f32 %v729, %v735
        %v748 = vadd.f32 %v730, %v737
        %v749 = vadd.f32 %v731, %v739
        %v750 = vadd.f32 %v732, %v736
        %v751 = vadd.f32 %v733, %v738
        %v752 = vmul.f32 %v141, 0.043175146
        %v753 = vmul.f32 %v142, 0.043175146
        %vm756 = vcmask 1040384
        %v757 = vrot.slane %v578, 7
        %v758 = vrot.slane %v579, 7
        %v759 = vrot.slane %v580, 7
        %v760 = vsel %vm756, %v757, %v759
        %v761 = vrot.slane %v581, 7
        %v762 = vsel %vm756, %v758, %v761
        %v763 = vrot.slane %v752, 7
        %v764 = vsel %vm756, %v759, %v763
        %v765 = vrot.slane %v753, 7
        %v766 = vsel %vm756, %v761, %v765
        %v773 = vadd.f32 %v746, %v757
        %v774 = vadd.f32 %v747, %v758
        %v775 = vadd.f32 %v748, %v760
        %v776 = vadd.f32 %v749, %v762
        %v777 = vadd.f32 %v750, %v764
        %v778 = vadd.f32 %v751, %v766
        %v779 = vmul.f32 %v141, 0.011002004
        %v780 = vmul.f32 %v142, 0.011002004
        %v781 = vadd.f32 %v773, %v572
        %v782 = vadd.f32 %v774, %v573
        %v783 = vadd.f32 %v775, %v574
        %v784 = vadd.f32 %v776, %v575
        %v785 = vadd.f32 %v777, %v779
        %v786 = vadd.f32 %v778, %v780
        %v787 = vmul.f32 %v781, 0.011002004
        %v788 = vmul.f32 %v782, 0.011002004
        %v789 = vmul.f32 %v783, 0.011002004
        %v790 = vmul.f32 %v784, 0.011002004
        %v791 = vmul.f32 %v785, 0.011002004
        %v792 = vmul.f32 %v786, 0.011002004
        %v793 = vmul.f32 %v781, 0.043175146
        %v794 = vmul.f32 %v782, 0.043175146
        %v795 = vmul.f32 %v783, 0.043175146
        %v796 = vmul.f32 %v784, 0.043175146
        %v797 = vmul.f32 %v785, 0.043175146
        %v798 = vmul.f32 %v786, 0.043175146
        %805 = vrot.lane.b32.xlu0 %v793, 127
        %v806 = vpop.permute.xlu0 %805
        %807 = vrot.lane.b32.xlu0 %v794, 127
        %v808 = vpop.permute.xlu0 %807
        %809 = vrot.lane.b32.xlu0 %v795, 127
        %v810 = vpop.permute.xlu0 %809
        %811 = vrot.lane.b32.xlu0 %v796, 127
        %v812 = vpop.permute.xlu0 %811
        %813 = vrot.lane.b32.xlu0 %v797, 127
        %v814 = vpop.permute.xlu0 %813
        %815 = vrot.lane.b32.xlu0 %v798, 127
        %v816 = vpop.permute.xlu0 %815
        %v817 = vsel %vm357, %v806, %v808
        %v818 = vsel %vm357, %v810, %v812
        %v819 = vsel %vm357, %v814, %v816
        %v826 = vadd.f32 %v787, %v817
        %v827 = vadd.f32 %v788, %v808
        %v828 = vadd.f32 %v789, %v818
        %v829 = vadd.f32 %v790, %v812
        %v830 = vadd.f32 %v791, %v819
        %v831 = vadd.f32 %v792, %v816
        %v832 = vmul.f32 %v781, 0.11464352
        %v833 = vmul.f32 %v782, 0.11464352
        %v834 = vmul.f32 %v783, 0.11464352
        %v835 = vmul.f32 %v784, 0.11464352
        %v836 = vmul.f32 %v785, 0.11464352
        %v837 = vmul.f32 %v786, 0.11464352
        %844 = vrot.lane.b32.xlu0 %v832, 126
        %v845 = vpop.permute.xlu0 %844
        %846 = vrot.lane.b32.xlu0 %v833, 126
        %v847 = vpop.permute.xlu0 %846
        %848 = vrot.lane.b32.xlu0 %v834, 126
        %v849 = vpop.permute.xlu0 %848
        %850 = vrot.lane.b32.xlu0 %v835, 126
        %v851 = vpop.permute.xlu0 %850
        %852 = vrot.lane.b32.xlu0 %v836, 126
        %v853 = vpop.permute.xlu0 %852
        %854 = vrot.lane.b32.xlu0 %v837, 126
        %v855 = vpop.permute.xlu0 %854
        %v856 = vsel %vm397, %v845, %v847
        %v857 = vsel %vm397, %v849, %v851
        %v858 = vsel %vm397, %v853, %v855
        %v865 = vadd.f32 %v826, %v856
        %v866 = vadd.f32 %v827, %v847
        %v867 = vadd.f32 %v828, %v857
        %v868 = vadd.f32 %v829, %v851
        %v869 = vadd.f32 %v830, %v858
        %v870 = vadd.f32 %v831, %v855
        %v871 = vmul.f32 %v781, 0.2059771
        %v872 = vmul.f32 %v782, 0.2059771
        %v873 = vmul.f32 %v783, 0.2059771
        %v874 = vmul.f32 %v784, 0.2059771
        %v875 = vmul.f32 %v785, 0.2059771
        %v876 = vmul.f32 %v786, 0.2059771
        %883 = vrot.lane.b32.xlu0 %v871, 125
        %v884 = vpop.permute.xlu0 %883
        %885 = vrot.lane.b32.xlu0 %v872, 125
        %v886 = vpop.permute.xlu0 %885
        %887 = vrot.lane.b32.xlu0 %v873, 125
        %v888 = vpop.permute.xlu0 %887
        %889 = vrot.lane.b32.xlu0 %v874, 125
        %v890 = vpop.permute.xlu0 %889
        %891 = vrot.lane.b32.xlu0 %v875, 125
        %v892 = vpop.permute.xlu0 %891
        %893 = vrot.lane.b32.xlu0 %v876, 125
        %v894 = vpop.permute.xlu0 %893
        %v895 = vsel %vm437, %v884, %v886
        %v896 = vsel %vm437, %v888, %v890
        %v897 = vsel %vm437, %v892, %v894
        %v904 = vadd.f32 %v865, %v895
        %v905 = vadd.f32 %v866, %v886
        %v906 = vadd.f32 %v867, %v896
        %v907 = vadd.f32 %v868, %v890
        %v908 = vadd.f32 %v869, %v897
        %v909 = vadd.f32 %v870, %v894
        %v910 = vmul.f32 %v781, 0.25040448
        %v911 = vmul.f32 %v782, 0.25040448
        %v912 = vmul.f32 %v783, 0.25040448
        %v913 = vmul.f32 %v784, 0.25040448
        %v914 = vmul.f32 %v785, 0.25040448
        %v915 = vmul.f32 %v786, 0.25040448
        %922 = vrot.lane.b32.xlu0 %v910, 124
        %v923 = vpop.permute.xlu0 %922
        %924 = vrot.lane.b32.xlu0 %v911, 124
        %v925 = vpop.permute.xlu0 %924
        %926 = vrot.lane.b32.xlu0 %v912, 124
        %v927 = vpop.permute.xlu0 %926
        %928 = vrot.lane.b32.xlu0 %v913, 124
        %v929 = vpop.permute.xlu0 %928
        %930 = vrot.lane.b32.xlu0 %v914, 124
        %v931 = vpop.permute.xlu0 %930
        %932 = vrot.lane.b32.xlu0 %v915, 124
        %v933 = vpop.permute.xlu0 %932
        %v934 = vsel %vm465, %v923, %v925
        %v935 = vsel %vm465, %v927, %v929
        %v936 = vsel %vm465, %v931, %v933
        %v943 = vadd.f32 %v904, %v934
        %v944 = vadd.f32 %v905, %v925
        %v945 = vadd.f32 %v906, %v935
        %v946 = vadd.f32 %v907, %v929
        %v947 = vadd.f32 %v908, %v936
        %v948 = vadd.f32 %v909, %v933
        %949 = vrot.lane.b32.xlu0 %v871, 123
        %v950 = vpop.permute.xlu0 %949
        %951 = vrot.lane.b32.xlu0 %v872, 123
        %v952 = vpop.permute.xlu0 %951
        %953 = vrot.lane.b32.xlu0 %v873, 123
        %v954 = vpop.permute.xlu0 %953
        %955 = vrot.lane.b32.xlu0 %v874, 123
        %v956 = vpop.permute.xlu0 %955
        %957 = vrot.lane.b32.xlu0 %v875, 123
        %v958 = vpop.permute.xlu0 %957
        %959 = vrot.lane.b32.xlu0 %v876, 123
        %v960 = vpop.permute.xlu0 %959
        %v961 = vsel %vm493, %v950, %v952
        %v962 = vsel %vm493, %v954, %v956
        %v963 = vsel %vm493, %v958, %v960
        %v970 = vadd.f32 %v943, %v961
        %v971 = vadd.f32 %v944, %v952
        %v972 = vadd.f32 %v945, %v962
        %v973 = vadd.f32 %v946, %v956
        %v974 = vadd.f32 %v947, %v963
        %v975 = vadd.f32 %v948, %v960
        %976 = vrot.lane.b32.xlu0 %v832, 122
        %v977 = vpop.permute.xlu0 %976
        %978 = vrot.lane.b32.xlu0 %v833, 122
        %v979 = vpop.permute.xlu0 %978
        %980 = vrot.lane.b32.xlu0 %v834, 122
        %v981 = vpop.permute.xlu0 %980
        %982 = vrot.lane.b32.xlu0 %v835, 122
        %v983 = vpop.permute.xlu0 %982
        %984 = vrot.lane.b32.xlu0 %v836, 122
        %v985 = vpop.permute.xlu0 %984
        %986 = vrot.lane.b32.xlu0 %v837, 122
        %v987 = vpop.permute.xlu0 %986
        %v988 = vsel %vm527, %v977, %v979
        %v989 = vsel %vm527, %v981, %v983
        %v990 = vsel %vm527, %v985, %v987
        %v997 = vadd.f32 %v970, %v988
        %v998 = vadd.f32 %v971, %v979
        %v999 = vadd.f32 %v972, %v989
        %v1000 = vadd.f32 %v973, %v983
        %v1001 = vadd.f32 %v974, %v990
        %v1002 = vadd.f32 %v975, %v987
        %1003 = vrot.lane.b32.xlu0 %v793, 121
        %v1004 = vpop.permute.xlu0 %1003
        %1005 = vrot.lane.b32.xlu0 %v794, 121
        %v1006 = vpop.permute.xlu0 %1005
        %1007 = vrot.lane.b32.xlu0 %v795, 121
        %v1008 = vpop.permute.xlu0 %1007
        %1009 = vrot.lane.b32.xlu0 %v796, 121
        %v1010 = vpop.permute.xlu0 %1009
        %1011 = vrot.lane.b32.xlu0 %v797, 121
        %v1012 = vpop.permute.xlu0 %1011
        %1013 = vrot.lane.b32.xlu0 %v798, 121
        %v1014 = vpop.permute.xlu0 %1013
        %vm1015 = vcmask 990208
        %v1016 = vsel %vm1015, %v1004, %v1006
        %v1017 = vsel %vm1015, %v1008, %v1010
        %v1018 = vsel %vm1015, %v1012, %v1014
        %v1025 = vadd.f32 %v997, %v1016
        %v1026 = vadd.f32 %v998, %v1006
        %v1027 = vadd.f32 %v999, %v1017
        %v1028 = vadd.f32 %v1000, %v1010
        %v1029 = vadd.f32 %v1001, %v1018
        %v1030 = vadd.f32 %v1002, %v1014
        %1037 = vrot.lane.b32.xlu0 %v787, 120
        %v1038 = vpop.permute.xlu0 %1037
        %1039 = vrot.lane.b32.xlu0 %v788, 120
        %v1040 = vpop.permute.xlu0 %1039
        %1041 = vrot.lane.b32.xlu0 %v789, 120
        %v1042 = vpop.permute.xlu0 %1041
        %1043 = vrot.lane.b32.xlu0 %v790, 120
        %v1044 = vpop.permute.xlu0 %1043
        %1045 = vrot.lane.b32.xlu0 %v791, 120
        %v1046 = vpop.permute.xlu0 %1045
        %1047 = vrot.lane.b32.xlu0 %v792, 120
        %v1048 = vpop.permute.xlu0 %1047
        %vm1049 = vcmask 982016
        %v1050 = vsel %vm1049, %v1038, %v1040
        %v1051 = vsel %vm1049, %v1042, %v1044
        %v1052 = vsel %vm1049, %v1046, %v1048
        %v1059 = vadd.f32 %v1025, %v1050
        %v1060 = vadd.f32 %v1026, %v1040
        %v1061 = vadd.f32 %v1027, %v1051
        %v1062 = vadd.f32 %v1028, %v1044
        %v1063 = vadd.f32 %v1029, %v1052
        %v1064 = vadd.f32 %v1030, %v1048
        %1071 = vrot.lane.b32.xlu0 %v1059, 126
        %v1072 = vpop.permute.xlu0 %1071
        %1073 = vrot.lane.b32.xlu0 %v1060, 126
        %v1074 = vpop.permute.xlu0 %1073
        %1075 = vrot.lane.b32.xlu0 %v1061, 126
        %v1076 = vpop.permute.xlu0 %1075
        %1077 = vrot.lane.b32.xlu0 %v1062, 126
        %v1078 = vpop.permute.xlu0 %1077
        %1079 = vrot.lane.b32.xlu0 %v1063, 126
        %v1080 = vpop.permute.xlu0 %1079
        %1081 = vrot.lane.b32.xlu0 %v1064, 126
        %v1082 = vpop.permute.xlu0 %1081
        %v1083 = vsel %vm397, %v1072, %v1074
        %v1084 = vsel %vm397, %v1076, %v1078
        %v1085 = vsel %vm397, %v1080, %v1082
        %s1089 = scalar_lea.vmem %s134, 16 [#allocation5]
        %1090 = vst [vmem:[%s1089 - $0x2] sm:$0xfc] %v1083
        %1091 = vst [vmem:[%s1089 + $0x6] sm:$0xff] %v1084
        %1092 = vst [vmem:[%s1089 + $0xe] sm:$0x3] %v1085
        %v1093 = vmul.f32 %v135, 0.002218196
        %v1094 = vmul.f32 %v136, 0.002218196
        %v1095 = vmul.f32 %v137, 0.002218196
        %v1096 = vmul.f32 %v138, 0.002218196
        %v1097 = vmul.f32 %v135, 0.008773135
        %v1098 = vmul.f32 %v136, 0.008773135
        %v1099 = vmul.f32 %v137, 0.008773135
        %v1100 = vmul.f32 %v138, 0.008773135
        %v1101 = vmul.f32 %v139, 0.008773135
        %v1102 = vmul.f32 %v140, 0.008773135
        %v1109 = vrot.slane %v1097, 1
        %v1110 = vrot.slane %v1099, 1
        %v1111 = vsel %vm161, %v1109, %v1110
        %v1112 = vrot.slane %v1098, 1
        %v1113 = vrot.slane %v1100, 1
        %v1114 = vsel %vm161, %v1112, %v1113
        %v1115 = vrot.slane %v1101, 1
        %v1116 = vsel %vm161, %v1110, %v1115
        %v1117 = vrot.slane %v1102, 1
        %v1118 = vsel %vm161, %v1113, %v1117
        %v1123 = vadd.f32 %v1093, %v1111
        %v1124 = vadd.f32 %v1094, %v1114
        %v1125 = vadd.f32 %v1095, %v1116
        %v1126 = vadd.f32 %v1096, %v1118
        %v1127 = vmul.f32 %v135, 0.027023157
        %v1128 = vmul.f32 %v136, 0.027023157
        %v1129 = vmul.f32 %v137, 0.027023157
        %v1130 = vmul.f32 %v138, 0.027023157
        %v1131 = vmul.f32 %v139, 0.027023157
        %v1132 = vmul.f32 %v140, 0.027023157
        %v1139 = vrot.slane %v1127, 2
        %v1140 = vrot.slane %v1129, 2
        %v1141 = vsel %vm196, %v1139, %v1140
        %v1142 = vrot.slane %v1128, 2
        %v1143 = vrot.slane %v1130, 2
        %v1144 = vsel %vm196, %v1142, %v1143
        %v1145 = vrot.slane %v1131, 2
        %v1146 = vsel %vm196, %v1140, %v1145
        %v1147 = vrot.slane %v1132, 2
        %v1148 = vsel %vm196, %v1143, %v1147
        %v1153 = vadd.f32 %v1123, %v1141
        %v1154 = vadd.f32 %v1124, %v1144
        %v1155 = vadd.f32 %v1125, %v1146
        %v1156 = vadd.f32 %v1126, %v1148
        %v1157 = vmul.f32 %v135, 0.064825185
        %v1158 = vmul.f32 %v136, 0.064825185
        %v1159 = vmul.f32 %v137, 0.064825185
        %v1160 = vmul.f32 %v138, 0.064825185
        %v1161 = vmul.f32 %v139, 0.064825185
        %v1162 = vmul.f32 %v140, 0.064825185
        %v1169 = vrot.slane %v1157, 3
        %v1170 = vrot.slane %v1159, 3
        %v1171 = vsel %vm231, %v1169, %v1170
        %v1172 = vrot.slane %v1158, 3
        %v1173 = vrot.slane %v1160, 3
        %v1174 = vsel %vm231, %v1172, %v1173
        %v1175 = vrot.slane %v1161, 3
        %v1176 = vsel %vm231, %v1170, %v1175
        %v1177 = vrot.slane %v1162, 3
        %v1178 = vsel %vm231, %v1173, %v1177
        %v1183 = vadd.f32 %v1153, %v1171
        %v1184 = vadd.f32 %v1154, %v1174
        %v1185 = vadd.f32 %v1155, %v1176
        %v1186 = vadd.f32 %v1156, %v1178
        %v1187 = vmul.f32 %v135, 0.12110939
        %v1188 = vmul.f32 %v136, 0.12110939
        %v1189 = vmul.f32 %v137, 0.12110939
        %v1190 = vmul.f32 %v138, 0.12110939
        %v1191 = vmul.f32 %v139, 0.12110939
        %v1192 = vmul.f32 %v140, 0.12110939
        %v1199 = vrot.slane %v1187, 4
        %v1200 = vrot.slane %v1189, 4
        %v1201 = vsel %vm254, %v1199, %v1200
        %v1202 = vrot.slane %v1188, 4
        %v1203 = vrot.slane %v1190, 4
        %v1204 = vsel %vm254, %v1202, %v1203
        %v1205 = vrot.slane %v1191, 4
        %v1206 = vsel %vm254, %v1200, %v1205
        %v1207 = vrot.slane %v1192, 4
        %v1208 = vsel %vm254, %v1203, %v1207
        %v1213 = vadd.f32 %v1183, %v1201
        %v1214 = vadd.f32 %v1184, %v1204
        %v1215 = vadd.f32 %v1185, %v1206
        %v1216 = vadd.f32 %v1186, %v1208
        %v1217 = vmul.f32 %v135, 0.17621312
        %v1218 = vmul.f32 %v136, 0.17621312
        %v1219 = vmul.f32 %v137, 0.17621312
        %v1220 = vmul.f32 %v138, 0.17621312
        %v1221 = vmul.f32 %v139, 0.17621312
        %v1222 = vmul.f32 %v140, 0.17621312
        %v1229 = vrot.slane %v1217, 5
        %v1230 = vrot.slane %v1219, 5
        %v1231 = vsel %vm277, %v1229, %v1230
        %v1232 = vrot.slane %v1218, 5
        %v1233 = vrot.slane %v1220, 5
        %v1234 = vsel %vm277, %v1232, %v1233
        %v1235 = vrot.slane %v1221, 5
        %v1236 = vsel %vm277, %v1230, %v1235
        %v1237 = vrot.slane %v1222, 5
        %v1238 = vsel %vm277, %v1233, %v1237
        %v1243 = vadd.f32 %v1213, %v1231
        %v1244 = vadd.f32 %v1214, %v1234
        %v1245 = vadd.f32 %v1215, %v1236
        %v1246 = vadd.f32 %v1216, %v1238
        %v1247 = vmul.f32 %v135, 0.19967563
        %v1248 = vmul.f32 %v136, 0.19967563
        %v1249 = vmul.f32 %v137, 0.19967563
        %v1250 = vmul.f32 %v138, 0.19967563
        %v1251 = vmul.f32 %v139, 0.19967563
        %v1252 = vmul.f32 %v140, 0.19967563
        %v1259 = vrot.slane %v1247, 6
        %v1260 = vrot.slane %v1249, 6
        %v1261 = vsel %vm304, %v1259, %v1260
        %v1262 = vrot.slane %v1248, 6
        %v1263 = vrot.slane %v1250, 6
        %v1264 = vsel %vm304, %v1262, %v1263
        %v1265 = vrot.slane %v1251, 6
        %v1266 = vsel %vm304, %v1260, %v1265
        %v1267 = vrot.slane %v1252, 6
        %v1268 = vsel %vm304, %v1263, %v1267
        %v1273 = vadd.f32 %v1243, %v1261
        %v1274 = vadd.f32 %v1244, %v1264
        %v1275 = vadd.f32 %v1245, %v1266
        %v1276 = vadd.f32 %v1246, %v1268
        %v1277 = vrot.slane %v1217, 7
        %v1278 = vrot.slane %v1219, 7
        %v1279 = vsel %vm756, %v1277, %v1278
        %v1280 = vrot.slane %v1218, 7
        %v1281 = vrot.slane %v1220, 7
        %v1282 = vsel %vm756, %v1280, %v1281
        %v1283 = vrot.slane %v1221, 7
        %v1284 = vsel %vm756, %v1278, %v1283
        %v1285 = vrot.slane %v1222, 7
        %v1286 = vsel %vm756, %v1281, %v1285
        %v1291 = vadd.f32 %v1273, %v1279
        %v1292 = vadd.f32 %v1274, %v1282
        %v1293 = vadd.f32 %v1275, %v1284
        %v1294 = vadd.f32 %v1276, %v1286
        %v1295 = vadd.f32 %v1291, %v1189
        %v1296 = vadd.f32 %v1292, %v1190
        %v1297 = vadd.f32 %v1293, %v1191
        %v1298 = vadd.f32 %v1294, %v1192
        %v1299 = vmul.f32 %v141, 0.064825185
        %v1300 = vmul.f32 %v142, 0.064825185
        %v1303 = vrot.slane %v1159, 1
        %v1304 = vrot.slane %v1161, 1
        %v1305 = vsel %vm161, %v1303, %v1304
        %v1306 = vrot.slane %v1160, 1
        %v1307 = vrot.slane %v1162, 1
        %v1308 = vsel %vm161, %v1306, %v1307
        %v1309 = vrot.slane %v1299, 1
        %v1310 = vsel %vm161, %v1304, %v1309
        %v1311 = vrot.slane %v1300, 1
        %v1312 = vsel %vm161, %v1307, %v1311
        %v1317 = vadd.f32 %v1295, %v1305
        %v1318 = vadd.f32 %v1296, %v1308
        %v1319 = vadd.f32 %v1297, %v1310
        %v1320 = vadd.f32 %v1298, %v1312
        %v1321 = vmul.f32 %v141, 0.027023157
        %v1322 = vmul.f32 %v142, 0.027023157
        %v1325 = vrot.slane %v1321, 2
        %v1326 = vsel %vm196, %v1145, %v1325
        %v1327 = vrot.slane %v1322, 2
        %v1328 = vsel %vm196, %v1147, %v1327
        %v1331 = vadd.f32 %v1317, %v1146
        %v1332 = vadd.f32 %v1318, %v1148
        %v1333 = vadd.f32 %v1319, %v1326
        %v1334 = vadd.f32 %v1320, %v1328
        %v1335 = vmul.f32 %v141, 0.008773135
        %v1336 = vmul.f32 %v142, 0.008773135
        %v1339 = vrot.slane %v1099, 3
        %v1340 = vrot.slane %v1101, 3
        %v1341 = vsel %vm231, %v1339, %v1340
        %v1342 = vrot.slane %v1100, 3
        %v1343 = vrot.slane %v1102, 3
        %v1344 = vsel %vm231, %v1342, %v1343
        %v1345 = vrot.slane %v1335, 3
        %v1346 = vsel %vm231, %v1340, %v1345
        %v1347 = vrot.slane %v1336, 3
        %v1348 = vsel %vm231, %v1343, %v1347
        %v1353 = vadd.f32 %v1331, %v1341
        %v1354 = vadd.f32 %v1332, %v1344
        %v1355 = vadd.f32 %v1333, %v1346
        %v1356 = vadd.f32 %v1334, %v1348
        %v1357 = vmul.f32 %v139, 0.002218196
        %v1358 = vmul.f32 %v140, 0.002218196
        %v1359 = vmul.f32 %v141, 0.002218196
        %v1360 = vmul.f32 %v142, 0.002218196
        %v1367 = vrot.slane %v1095, 4
        %v1368 = vrot.slane %v1357, 4
        %v1369 = vsel %vm254, %v1367, %v1368
        %v1370 = vrot.slane %v1096, 4
        %v1371 = vrot.slane %v1358, 4
        %v1372 = vsel %vm254, %v1370, %v1371
        %v1373 = vrot.slane %v1359, 4
        %v1374 = vsel %vm254, %v1368, %v1373
        %v1375 = vrot.slane %v1360, 4
        %v1376 = vsel %vm254, %v1371, %v1375
        %v1381 = vadd.f32 %v1353, %v1369
        %v1382 = vadd.f32 %v1354, %v1372
        %v1383 = vadd.f32 %v1355, %v1374
        %v1384 = vadd.f32 %v1356, %v1376
        %v1385 = vmul.f32 %v1381, 0.002218196
        %v1386 = vmul.f32 %v1383, 0.002218196
        %v1387 = vmul.f32 %v1381, 0.008773135
        %v1388 = vmul.f32 %v1382, 0.008773135
        %v1389 = vmul.f32 %v1383, 0.008773135
        %v1390 = vmul.f32 %v1384, 0.008773135
        %1395 = vrot.lane.b32.xlu0 %v1387, 127
        %v1396 = vpop.permute.xlu0 %1395
        %1397 = vrot.lane.b32.xlu0 %v1388, 127
        %v1398 = vpop.permute.xlu0 %1397
        %1399 = vrot.lane.b32.xlu0 %v1389, 127
        %v1400 = vpop.permute.xlu0 %1399
        %1401 = vrot.lane.b32.xlu0 %v1390, 127
        %v1402 = vpop.permute.xlu0 %1401
        %v1403 = vsel %vm357, %v1396, %v1398
        %v1404 = vsel %vm357, %v1400, %v1402
        %v1407 = vadd.f32 %v1385, %v1403
        %v1408 = vadd.f32 %v1386, %v1404
        %v1409 = vmul.f32 %v1381, 0.027023157
        %v1410 = vmul.f32 %v1382, 0.027023157
        %v1411 = vmul.f32 %v1383, 0.027023157
        %v1412 = vmul.f32 %v1384, 0.027023157
        %1417 = vrot.lane.b32.xlu0 %v1409, 126
        %v1418 = vpop.permute.xlu0 %1417
        %1419 = vrot.lane.b32.xlu0 %v1410, 126
        %v1420 = vpop.permute.xlu0 %1419
        %1421 = vrot.lane.b32.xlu0 %v1411, 126
        %v1422 = vpop.permute.xlu0 %1421
        %1423 = vrot.lane.b32.xlu0 %v1412, 126
        %v1424 = vpop.permute.xlu0 %1423
        %v1425 = vsel %vm397, %v1418, %v1420
        %v1426 = vsel %vm397, %v1422, %v1424
        %v1429 = vadd.f32 %v1407, %v1425
        %v1430 = vadd.f32 %v1408, %v1426
        %v1431 = vmul.f32 %v1381, 0.064825185
        %v1432 = vmul.f32 %v1382, 0.064825185
        %v1433 = vmul.f32 %v1383, 0.064825185
        %v1434 = vmul.f32 %v1384, 0.064825185
        %1439 = vrot.lane.b32.xlu0 %v1431, 125
        %v1440 = vpop.permute.xlu0 %1439
        %1441 = vrot.lane.b32.xlu0 %v1432, 125
        %v1442 = vpop.permute.xlu0 %1441
        %1443 = vrot.lane.b32.xlu0 %v1433, 125
        %v1444 = vpop.permute.xlu0 %1443
        %1445 = vrot.lane.b32.xlu0 %v1434, 125
        %v1446 = vpop.permute.xlu0 %1445
        %v1447 = vsel %vm437, %v1440, %v1442
        %v1448 = vsel %vm437, %v1444, %v1446
        %v1451 = vadd.f32 %v1429, %v1447
        %v1452 = vadd.f32 %v1430, %v1448
        %v1453 = vmul.f32 %v1381, 0.12110939
        %v1454 = vmul.f32 %v1382, 0.12110939
        %v1455 = vmul.f32 %v1383, 0.12110939
        %v1456 = vmul.f32 %v1384, 0.12110939
        %1461 = vrot.lane.b32.xlu0 %v1453, 124
        %v1462 = vpop.permute.xlu0 %1461
        %1463 = vrot.lane.b32.xlu0 %v1454, 124
        %v1464 = vpop.permute.xlu0 %1463
        %1465 = vrot.lane.b32.xlu0 %v1455, 124
        %v1466 = vpop.permute.xlu0 %1465
        %1467 = vrot.lane.b32.xlu0 %v1456, 124
        %v1468 = vpop.permute.xlu0 %1467
        %v1469 = vsel %vm465, %v1462, %v1464
        %v1470 = vsel %vm465, %v1466, %v1468
        %v1473 = vadd.f32 %v1451, %v1469
        %v1474 = vadd.f32 %v1452, %v1470
        %v1475 = vmul.f32 %v1381, 0.17621312
        %v1476 = vmul.f32 %v1382, 0.17621312
        %v1477 = vmul.f32 %v1383, 0.17621312
        %v1478 = vmul.f32 %v1384, 0.17621312
        %1483 = vrot.lane.b32.xlu0 %v1475, 123
        %v1484 = vpop.permute.xlu0 %1483
        %1485 = vrot.lane.b32.xlu0 %v1476, 123
        %v1486 = vpop.permute.xlu0 %1485
        %1487 = vrot.lane.b32.xlu0 %v1477, 123
        %v1488 = vpop.permute.xlu0 %1487
        %1489 = vrot.lane.b32.xlu0 %v1478, 123
        %v1490 = vpop.permute.xlu0 %1489
        %v1491 = vsel %vm493, %v1484, %v1486
        %v1492 = vsel %vm493, %v1488, %v1490
        %v1495 = vadd.f32 %v1473, %v1491
        %v1496 = vadd.f32 %v1474, %v1492
        %v1497 = vmul.f32 %v1381, 0.19967563
        %v1498 = vmul.f32 %v1382, 0.19967563
        %v1499 = vmul.f32 %v1383, 0.19967563
        %v1500 = vmul.f32 %v1384, 0.19967563
        %1505 = vrot.lane.b32.xlu0 %v1497, 122
        %v1506 = vpop.permute.xlu0 %1505
        %1507 = vrot.lane.b32.xlu0 %v1498, 122
        %v1508 = vpop.permute.xlu0 %1507
        %1509 = vrot.lane.b32.xlu0 %v1499, 122
        %v1510 = vpop.permute.xlu0 %1509
        %1511 = vrot.lane.b32.xlu0 %v1500, 122
        %v1512 = vpop.permute.xlu0 %1511
        %v1513 = vsel %vm527, %v1506, %v1508
        %v1514 = vsel %vm527, %v1510, %v1512
        %v1517 = vadd.f32 %v1495, %v1513
        %v1518 = vadd.f32 %v1496, %v1514
        %1519 = vrot.lane.b32.xlu0 %v1475, 121
        %v1520 = vpop.permute.xlu0 %1519
        %1521 = vrot.lane.b32.xlu0 %v1476, 121
        %v1522 = vpop.permute.xlu0 %1521
        %1523 = vrot.lane.b32.xlu0 %v1477, 121
        %v1524 = vpop.permute.xlu0 %1523
        %1525 = vrot.lane.b32.xlu0 %v1478, 121
        %v1526 = vpop.permute.xlu0 %1525
        %v1527 = vsel %vm1015, %v1520, %v1522
        %v1528 = vsel %vm1015, %v1524, %v1526
        %v1531 = vadd.f32 %v1517, %v1527
        %v1532 = vadd.f32 %v1518, %v1528
        %1533 = vrot.lane.b32.xlu0 %v1453, 120
        %v1534 = vpop.permute.xlu0 %1533
        %1535 = vrot.lane.b32.xlu0 %v1454, 120
        %v1536 = vpop.permute.xlu0 %1535
        %1537 = vrot.lane.b32.xlu0 %v1455, 120
        %v1538 = vpop.permute.xlu0 %1537
        %1539 = vrot.lane.b32.xlu0 %v1456, 120
        %v1540 = vpop.permute.xlu0 %1539
        %v1541 = vsel %vm1049, %v1534, %v1536
        %v1542 = vsel %vm1049, %v1538, %v1540
        %v1545 = vadd.f32 %v1531, %v1541
        %v1546 = vadd.f32 %v1532, %v1542
        %1547 = vrot.lane.b32.xlu0 %v1431, 119
        %v1548 = vpop.permute.xlu0 %1547
        %1549 = vrot.lane.b32.xlu0 %v1432, 119
        %v1550 = vpop.permute.xlu0 %1549
        %1551 = vrot.lane.b32.xlu0 %v1433, 119
        %v1552 = vpop.permute.xlu0 %1551
        %1553 = vrot.lane.b32.xlu0 %v1434, 119
        %v1554 = vpop.permute.xlu0 %1553
        %vm1555 = vcmask 973824
        %v1556 = vsel %vm1555, %v1548, %v1550
        %v1557 = vsel %vm1555, %v1552, %v1554
        %v1560 = vadd.f32 %v1545, %v1556
        %v1561 = vadd.f32 %v1546, %v1557
        %1562 = vrot.lane.b32.xlu0 %v1409, 118
        %v1563 = vpop.permute.xlu0 %1562
        %1564 = vrot.lane.b32.xlu0 %v1410, 118
        %v1565 = vpop.permute.xlu0 %1564
        %1566 = vrot.lane.b32.xlu0 %v1411, 118
        %v1567 = vpop.permute.xlu0 %1566
        %1568 = vrot.lane.b32.xlu0 %v1412, 118
        %v1569 = vpop.permute.xlu0 %1568
        %vm1570 = vcmask 965632
        %v1571 = vsel %vm1570, %v1563, %v1565
        %v1572 = vsel %vm1570, %v1567, %v1569
        %v1575 = vadd.f32 %v1560, %v1571
        %v1576 = vadd.f32 %v1561, %v1572
        %1577 = vrot.lane.b32.xlu0 %v1387, 117
        %v1578 = vpop.permute.xlu0 %1577
        %1579 = vrot.lane.b32.xlu0 %v1388, 117
        %v1580 = vpop.permute.xlu0 %1579
        %1581 = vrot.lane.b32.xlu0 %v1389, 117
        %v1582 = vpop.permute.xlu0 %1581
        %1583 = vrot.lane.b32.xlu0 %v1390, 117
        %v1584 = vpop.permute.xlu0 %1583
        %vm1585 = vcmask 957440
        %v1586 = vsel %vm1585, %v1578, %v1580
        %v1587 = vsel %vm1585, %v1582, %v1584
        %v1590 = vadd.f32 %v1575, %v1586
        %v1591 = vadd.f32 %v1576, %v1587
        %v1592 = vmul.f32 %v1382, 0.002218196
        %v1593 = vmul.f32 %v1384, 0.002218196
        %1598 = vrot.lane.b32.xlu0 %v1385, 116
        %v1599 = vpop.permute.xlu0 %1598
        %1600 = vrot.lane.b32.xlu0 %v1592, 116
        %v1601 = vpop.permute.xlu0 %1600
        %1602 = vrot.lane.b32.xlu0 %v1386, 116
        %v1603 = vpop.permute.xlu0 %1602
        %1604 = vrot.lane.b32.xlu0 %v1593, 116
        %v1605 = vpop.permute.xlu0 %1604
        %vm1606 = vcmask 949248
        %v1607 = vsel %vm1606, %v1599, %v1601
        %v1608 = vsel %vm1606, %v1603, %v1605
        %v1611 = vadd.f32 %v1590, %v1607
        %v1612 = vadd.f32 %v1591, %v1608
        %s1613 = scalar_lea.vmem %s134, 32 [#allocation5]
        %1614 = vst [vmem:[%s1613] sm:$0xff] %v1611
        %1615 = vst [vmem:[%s1613 + $0x8] sm:$0xff] %v1612
        %s1616 = sand.u32 %s52, 1
        %s1617 = scalar_lea.sflag [#allocation4], %s1616
        %s1618 = sand.u32 %s52, 1
        %s1619 = smul.addr %s1618, 48
        %s1620 = scalar_lea.vmem [#allocation5], %s1619
        // Predicated region
        $region29: #{tpu_custom_call.1} parent=23 // pred_check
          %p1621 = pneg %p62
        $region30: #{tpu_custom_call.1} parent=23 // pred_check_branch
          %1623 = sbr.rel (%p1621) target = $region32
        $region31: #{tpu_custom_call.1} parent=23 // pred_region
          %s1625 = ssub.s32 768, 768
          %1626 = vsyncadd %s1617, %s1625
          %s1627 = smul.addr %s18, 6
          %s1628 = smul.addr %s1627, 128
          %s1629 = scalar_lea.hbm %s1, %s1628
          %s1630 = sshll.u32 %s1620, 4
          %s1631 = int_to_ptr.vmem [resolvable:$true] %s1630
          %1636 = dma.vmem_to_hbm [thread:$0]  %s1631, 768, %s1629, %s1617, 128, 128, 8
        $region32: #{tpu_custom_call.1} parent=23 // pred_fallthru
          _
      $region24: #{tpu_custom_call.1} parent=5 // pred_fallthru
        _
      %p1637 = scmp.le.s32.totalorder 2, %s13
      // Predicated region
      $region33: #{tpu_custom_call.1} parent=5 // pred_check
        %p1638 = pneg %p1637
      $region34: #{tpu_custom_call.1} parent=5 // pred_check_branch
        %1640 = sbr.rel (%p1638) target = $region36
      $region35: #{tpu_custom_call.1} parent=5 // pred_region
        %s1641 = ssub.s32 %s13, 2
        // Predicated region
        $region37: #{tpu_custom_call.1} parent=35 // pred_check
          %p1642 = pneg %p68
        $region38: #{tpu_custom_call.1} parent=35 // pred_check_branch
          %1644 = sbr.rel (%p1642) target = $region40
        $region39: #{tpu_custom_call.1} parent=35 // pred_region
          %s1645 = sand.u32 %s53, 1
          %s1646 = scalar_lea.sflag [#allocation4], %s1645
          %s1647 = sand.u32 %s53, 1
          %s1648 = smul.addr %s1647, 48
          %s1649 = scalar_lea.vmem [#allocation5], %s1648
          %1650 = dma.done %s1646, 768
        $region40: #{tpu_custom_call.1} parent=35 // pred_fallthru
          _
      $region36: #{tpu_custom_call.1} parent=5 // pred_fallthru
        _
    $region6: #{tpu_custom_call.1} parent=1 // loop_footer
      %s17 = sadd.s32 1, %s13
    $region7: #{tpu_custom_call.1} parent=1 // loop_footer_branch
      %12 = sbr.rel target = $region3
    $region8: #{tpu_custom_call.1} parent=1 // loop_exit
      _
    %1651 = vsyncpa [#allocation3], 1
    %s1652 = scalar_lea.sflag [#allocation3], 1
    %1653 = vsyncpa %s1652, 1
    %1654 = vsyncpa [#allocation4], 1
    %s1655 = scalar_lea.sflag [#allocation4], 1
    %1656 = vsyncpa %s1655, 1

</llo_original>
